<compile_context>
chip_gen: v5e
topology: v5e:2x2
jax: 0.10.0
libtpu: 0.0.40
codegen_flags: <defaults>
</compile_context>

<pallas_src>
import jax
import jax.numpy as jnp
import numpy as np
from jax.experimental import pallas as pl
from jax.experimental.pallas import tpu as pltpu

NUM_INPUTS = 1
NUM_HIDDEN = 32          # num_hidden (and num_hidden_act)
NUM_LAYERS = 2
FG_BIAS = 1.0            # forget_gate_bias (only affects f-gate, which is pruned
                         # exactly because cx == 0 after reset_lstm(False))


def _sigmoid_fast(z):
    # 1/(1+exp(-z)) == 0.5*tanh(z/2)+0.5 : one EUP op instead of exp + recip.
    return 0.5 * jnp.tanh(0.5 * z) + 0.5


def amlv1_kernel(x_ref, lin1_ref, wl_ref, bl_ref, wo_ref, bo_ref, out_ref):
    """Transposed layout: activations are [features, coords].

    x_ref    : [1, TN]        lane-dense gradient row
    lin1_ref : [2H, 2]        col 0 = fused linear1/act_linear1 weight, col 1 = bias
    wl_ref   : [L, 6H, 2H]    fused block-diag LSTM input weights (i,o,g gates, f pruned)
    bl_ref   : [L, 6H, 1]     fused b_ih + b_hh per kept gate row
    wo_ref   : [2, 2H]        fused block-diag output projection (theta row, qt row)
    bo_ref   : [2, 1]
    out_ref  : [2, TN]        row 0 = theta, row 1 = qt
    """
    H2 = lin1_ref.shape[0]          # 2H  (x-stack rows 0:H, q-stack rows H:2H)
    H4 = 2 * H2                     # 4H  (sigmoid-gate width: i_fused | o_fused)
    L = wl_ref.shape[0]

    x_row = x_ref[...]                                   # [1, TN]
    w1 = lin1_ref[:, 0:1]                                # [2H, 1]
    b1 = lin1_ref[:, 1:2]                                # [2H, 1]
    h = w1 * x_row + b1                                  # [2H, TN]  (linear1 / act_linear1)

    for l in range(L):                                   # static unroll, L = 2
        gates = (jnp.dot(wl_ref[l], h, preferred_element_type=jnp.float32)
                 + bl_ref[l])                            # [6H, TN]
        sig = _sigmoid_fast(gates[0:H4, :])              # [4H, TN] : i_fused | o_fused
        g_f = jnp.tanh(gates[H4:, :])                    # [2H, TN] : g_fused
        i_f = sig[0:H2, :]
        o_f = sig[H2:H4, :]
        c = i_f * g_f                                    # cy = f*0 + i*g
        h = o_f * jnp.tanh(c)                            # [2H, TN]

    # Fused linear_out / act_linear_out
    out_ref[...] = (jnp.dot(wo_ref[...], h, preferred_element_type=jnp.float32)
                    + bo_ref[...])                       # [2, TN]


def adaptive_meta_learner_v1(x, packed, *, tile_n=512):
    """x: [N] float32 flat gradients.  packed = pack_params(params).
    Returns (theta:[N], qt:[N])."""
    N = x.shape[0]
    tile_n = min(tile_n, N)
    assert N % tile_n == 0
    assert tile_n == N or tile_n % 128 == 0
    lin1, wl, bl, wo, bo = packed

    x_row = x.reshape(1, N).astype(jnp.float32)
    num_tiles = N // tile_n

    grid_spec = pltpu.PrefetchScalarGridSpec(
        num_scalar_prefetch=0,
        grid=(num_tiles,),
        in_specs=[
            pl.BlockSpec((1, tile_n), lambda i: (0, i)),
            pl.BlockSpec(lin1.shape, lambda i: (0, 0)),
            pl.BlockSpec(wl.shape, lambda i: (0, 0, 0)),
            pl.BlockSpec(bl.shape, lambda i: (0, 0, 0)),
            pl.BlockSpec(wo.shape, lambda i: (0, 0)),
            pl.BlockSpec(bo.shape, lambda i: (0, 0)),
        ],
        out_specs=pl.BlockSpec((2, tile_n), lambda i: (0, i)),
    )

    out = pl.pallas_call(
        amlv1_kernel,
        out_shape=jax.ShapeDtypeStruct((2, N), jnp.float32),
        grid_spec=grid_spec,
        compiler_params=pltpu.CompilerParams(
            dimension_semantics=("parallel",)),
    )(x_row, lin1, wl, bl, wo, bo)

    # torch .squeeze() on [N,1] -> [N]
    return out[0], out[1]


# ------------------------- parameter handling -------------------------------

def init_params(key, num_inputs=NUM_INPUTS, H=NUM_HIDDEN, L=NUM_LAYERS):
    """Deterministic PyTorch-style U(-1/sqrt(fan_in), 1/sqrt(fan_in)) init in
    native PyTorch layout: Linear W [out,in], b [out]; LSTMCell W_ih/W_hh
    [4H, H] with gate order (i, f, g, o), b_ih/b_hh [4H]."""
    keys = iter(jax.random.split(key, 40))

    def u(shape, fan_in):
        b = 1.0 / np.sqrt(fan_in)
        return jax.random.uniform(next(keys), shape, jnp.float32, -b, b)

    # linear1 / act_linear1 : in=1, out=H
    w1, b1 = u((H, num_inputs), num_inputs), u((H,), num_inputs)
    aw1, ab1 = u((H, num_inputs), num_inputs), u((H,), num_inputs)

    def lstm_stack():
        wih = jnp.stack([u((4 * H, H), H) for _ in range(L)])
        bih = jnp.stack([u((4 * H,), H) for _ in range(L)])
        whh = jnp.stack([u((4 * H, H), H) for _ in range(L)])
        bhh = jnp.stack([u((4 * H,), H) for _ in range(L)])
        return wih, bih, whh, bhh

    wih, bih, whh, bhh = lstm_stack()        # self.lstms
    awih, abih, awhh, abhh = lstm_stack()    # self.act_lstms

    # linear_out / act_linear_out : in=H, out=1
    wo, bo = u((1, H), H), u((1,), H)
    awo, abo = u((1, H), H), u((1,), H)

    return (w1, b1, aw1, ab1, wih, bih, whh, bhh,
            awih, abih, awhh, abhh, wo, bo, awo, abo)


def pack_params(params):
    """Repack PyTorch-layout params into fused, pruned, gate-reordered tensors.

    - Forget-gate rows and all W_hh are dropped (exactly zero contribution
      because hx = cx = 0 under reset_lstm(keep_states=False)).
    - b_ih + b_hh folded into one bias per kept gate row.
    - Two stacks fused block-diagonally: activation rows 0:H = x-stack,
      rows H:2H = q-stack.  Gate row order: i_x, i_q, o_x, o_q, g_x, g_q.
    """
    (w1, b1, aw1, ab1, wih, bih, whh, bhh,
     awih, abih, awhh, abhh, wo, bo, awo, abo) = params
    H = w1.shape[0]
    L = wih.shape[0]
    gate_idx = {'i': 0, 'f': 1, 'g': 2, 'o': 3}

    # linear1 / act_linear1 fused: [2H, 2]  (col 0 weight, col 1 bias)
    lin1 = jnp.stack([jnp.concatenate([w1[:, 0], aw1[:, 0]]),
                      jnp.concatenate([b1, ab1])], axis=1).astype(jnp.float32)

    zero = jnp.zeros((H, H), jnp.float32)
    Wl_list, bl_list = [], []
    for l in range(L):
        bx = bih[l] + bhh[l]        # fused bias, x-stack  [4H]
        bq = abih[l] + abhh[l]      # fused bias, q-stack  [4H]
        rows, brows = [], []
        for gate in ('i', 'o', 'g'):          # sigmoid gates first, then tanh
            gi = gate_idx[gate]
            # x-stack rows (only see cols 0:H of the fused activation)
            rows.append(jnp.concatenate([wih[l, gi * H:(gi + 1) * H, :], zero], axis=1))
            brows.append(bx[gi * H:(gi + 1) * H])
            # q-stack rows (only see cols H:2H)
            rows.append(jnp.concatenate([zero, awih[l, gi * H:(gi + 1) * H, :]], axis=1))
            brows.append(bq[gi * H:(gi + 1) * H])
        Wl_list.append(jnp.concatenate(rows, axis=0))                  # [6H, 2H]
        bl_list.append(jnp.concatenate(brows).reshape(6 * H, 1))       # [6H, 1]
    Wl = jnp.stack(Wl_list).astype(jnp.float32)                        # [L, 6H, 2H]
    bl = jnp.stack(bl_list).astype(jnp.float32)                        # [L, 6H, 1]

    # fused output projection: [2, 2H] block-diag + [2, 1] bias
    Wout = jnp.concatenate([
        jnp.concatenate([wo, jnp.zeros_like(wo)], axis=1),
        jnp.concatenate([jnp.zeros_like(awo), awo], axis=1)], axis=0
    ).astype(jnp.float32)
    bout = jnp.concatenate([bo.reshape(1, 1), abo.reshape(1, 1)],
                           axis=0).astype(jnp.float32)

    return (lin1, Wl, bl, Wout, bout)


# ------------------------- pure-JAX reference --------------------------------

def ref_forward(x, params):
    """Faithful pure-JAX reference of AdaptiveMetaLearnerV1.forward (including
    the redundant zero-state W_hh / forget-gate terms)."""
    (w1, b1, aw1, ab1, wih, bih, whh, bhh,
     awih, abih, awhh, abhh, wo, bo, awo, abo) = params
    H = w1.shape[0]
    x2 = x.reshape(-1, 1)
    x_t = x2 @ w1.T + b1
    q_t = x2 @ aw1.T + ab1
    zeros = jnp.zeros((x2.shape[0], H), jnp.float32)

    def sigmoid(z):
        return 1.0 / (1.0 + jnp.exp(-z))

    def cell(inp, W_ih, b_ih, W_hh, b_hh):
        hx = cx = zeros
        gates = inp @ W_ih.T + b_ih + hx @ W_hh.T + b_hh
        i = sigmoid(gates[:, 0 * H:1 * H])
        f = sigmoid(gates[:, 1 * H:2 * H] + FG_BIAS)
        g = jnp.tanh(gates[:, 2 * H:3 * H])
        o = sigmoid(gates[:, 3 * H:4 * H])
        cy = f * cx + i * g
        return o * jnp.tanh(cy)

    for l in range(NUM_LAYERS):
        x_t = cell(x_t, wih[l], bih[l], whh[l], bhh[l])
        q_t = cell(q_t, awih[l], abih[l], awhh[l], abhh[l])

    theta = (x_t @ wo.T + bo).reshape(-1)
    qt = (q_t @ awo.T + abo).reshape(-1)
    return theta, qt


if __name__ == "__main__":
    key = jax.random.PRNGKey(0)
    k_x, k_p = jax.random.split(key)

    N = 1024     # flattened optimizee-parameter coordinates (coordinate-wise batch)
    x = jax.random.normal(k_x, (N,), dtype=jnp.float32)
    params = init_params(k_p)
    packed = pack_params(params)

    theta, qt = adaptive_meta_learner_v1(x, packed, tile_n=512)  # grid of 2 parallel steps
    theta, qt = jax.block_until_ready((theta, qt))

    theta_ref, qt_ref = ref_forward(x, params)
    assert theta.shape == (N,) and qt.shape == (N,)
    np.testing.assert_allclose(np.asarray(theta), np.asarray(theta_ref),
                               rtol=1e-4, atol=1e-4)
    np.testing.assert_allclose(np.asarray(qt), np.asarray(qt_ref),
                               rtol=1e-4, atol=1e-4)

    print("KERNEL_OK")
</pallas_src>

<mosaic_0001>
module attributes {stable_mosaic.version = 11 : i64} {
  func.func @amlv1_kernel(%arg0: i32, %arg1: memref<1x512xf32, #tpu.memory_space<vmem>>, %arg2: memref<64x2xf32, #tpu.memory_space<vmem>>, %arg3: memref<2x192x64xf32, #tpu.memory_space<vmem>>, %arg4: memref<2x192x1xf32, #tpu.memory_space<vmem>>, %arg5: memref<2x64xf32, #tpu.memory_space<vmem>>, %arg6: memref<2x1xf32, #tpu.memory_space<vmem>>, %arg7: memref<2x512xf32, #tpu.memory_space<vmem>>) attributes {dimension_semantics = [#tpu.dimension_semantics<parallel>], iteration_bounds = array<i64: 2>, scalar_prefetch = 0 : i64, scratch_operands = 0 : i64, tpu.core_type = #tpu.core_type<tc>, window_params = [{transform_indices = @transform_0, window_bounds = array<i64: 1, 512>}, {pipeline_mode = #tpu.pipeline_mode<synchronous>, transform_indices = @transform_1, window_bounds = array<i64: 64, 2>}, {pipeline_mode = #tpu.pipeline_mode<synchronous>, transform_indices = @transform_2, window_bounds = array<i64: 2, 192, 64>}, {pipeline_mode = #tpu.pipeline_mode<synchronous>, transform_indices = @transform_3, window_bounds = array<i64: 2, 192, 1>}, {pipeline_mode = #tpu.pipeline_mode<synchronous>, transform_indices = @transform_4, window_bounds = array<i64: 2, 64>}, {pipeline_mode = #tpu.pipeline_mode<synchronous>, transform_indices = @transform_5, window_bounds = array<i64: 2, 1>}, {transform_indices = @transform_6, window_bounds = array<i64: 2, 512>}]} {
    %c0 = arith.constant 0 : index
    %c0_0 = arith.constant 0 : index
    %0 = vector.load %arg1[%c0, %c0_0] : memref<1x512xf32, #tpu.memory_space<vmem>>, vector<1x512xf32>
    %c0_1 = arith.constant 0 : index
    %c0_2 = arith.constant 0 : index
    %1 = vector.load %arg2[%c0_1, %c0_2] : memref<64x2xf32, #tpu.memory_space<vmem>>, vector<64x1xf32>
    %c0_3 = arith.constant 0 : index
    %c1 = arith.constant 1 : index
    %2 = vector.load %arg2[%c0_3, %c1] : memref<64x2xf32, #tpu.memory_space<vmem>>, vector<64x1xf32>
    %3 = vector.broadcast %1 : vector<64x1xf32> to vector<64x512xf32>
    %4 = vector.broadcast %0 : vector<1x512xf32> to vector<64x512xf32>
    %5 = arith.mulf %3, %4 : vector<64x512xf32>
    %6 = vector.broadcast %2 : vector<64x1xf32> to vector<64x512xf32>
    %7 = arith.addf %5, %6 : vector<64x512xf32>
    %c0_4 = arith.constant 0 : index
    %c0_5 = arith.constant 0 : index
    %c0_6 = arith.constant 0 : index
    %8 = vector.load %arg3[%c0_4, %c0_5, %c0_6] : memref<2x192x64xf32, #tpu.memory_space<vmem>>, vector<1x192x64xf32>
    %9 = vector.shape_cast %8 : vector<1x192x64xf32> to vector<192x64xf32>
    %cst = arith.constant dense<0.000000e+00> : vector<192x512xf32>
    %10 = tpu.matmul %9, %7, %cst {dimension_numbers = #tpu.dot_dimension_numbers<[1], [0], [0], [1], [0, 0, 1, 1], [], []>} : vector<192x64xf32>, vector<64x512xf32>, vector<192x512xf32> -> vector<192x512xf32>
    %c0_7 = arith.constant 0 : index
    %c0_8 = arith.constant 0 : index
    %c0_9 = arith.constant 0 : index
    %11 = vector.load %arg4[%c0_7, %c0_8, %c0_9] : memref<2x192x1xf32, #tpu.memory_space<vmem>>, vector<1x192x1xf32>
    %12 = vector.shape_cast %11 : vector<1x192x1xf32> to vector<192x1xf32>
    %13 = vector.broadcast %12 : vector<192x1xf32> to vector<192x512xf32>
    %14 = arith.addf %10, %13 : vector<192x512xf32>
    %15 = vector.extract_strided_slice %14 {offsets = [0, 0], sizes = [128, 512], strides = [1, 1]} : vector<192x512xf32> to vector<128x512xf32>
    %cst_10 = arith.constant 5.000000e-01 : f32
    %16 = vector.broadcast %cst_10 : f32 to vector<128x512xf32>
    %17 = arith.mulf %16, %15 : vector<128x512xf32>
    %18 = math.tanh %17 : vector<128x512xf32>
    %cst_11 = arith.constant 5.000000e-01 : f32
    %19 = vector.broadcast %cst_11 : f32 to vector<128x512xf32>
    %20 = arith.mulf %19, %18 : vector<128x512xf32>
    %cst_12 = arith.constant 5.000000e-01 : f32
    %21 = vector.broadcast %cst_12 : f32 to vector<128x512xf32>
    %22 = arith.addf %20, %21 : vector<128x512xf32>
    %23 = vector.extract_strided_slice %14 {offsets = [128, 0], sizes = [64, 512], strides = [1, 1]} : vector<192x512xf32> to vector<64x512xf32>
    %24 = math.tanh %23 : vector<64x512xf32>
    %25 = vector.extract_strided_slice %22 {offsets = [0, 0], sizes = [64, 512], strides = [1, 1]} : vector<128x512xf32> to vector<64x512xf32>
    %26 = vector.extract_strided_slice %22 {offsets = [64, 0], sizes = [64, 512], strides = [1, 1]} : vector<128x512xf32> to vector<64x512xf32>
    %27 = arith.mulf %25, %24 : vector<64x512xf32>
    %28 = math.tanh %27 : vector<64x512xf32>
    %29 = arith.mulf %26, %28 : vector<64x512xf32>
    %c1_13 = arith.constant 1 : index
    %c0_14 = arith.constant 0 : index
    %c0_15 = arith.constant 0 : index
    %30 = vector.load %arg3[%c1_13, %c0_14, %c0_15] : memref<2x192x64xf32, #tpu.memory_space<vmem>>, vector<1x192x64xf32>
    %31 = vector.shape_cast %30 : vector<1x192x64xf32> to vector<192x64xf32>
    %cst_16 = arith.constant dense<0.000000e+00> : vector<192x512xf32>
    %32 = tpu.matmul %31, %29, %cst_16 {dimension_numbers = #tpu.dot_dimension_numbers<[1], [0], [0], [1], [0, 0, 1, 1], [], []>} : vector<192x64xf32>, vector<64x512xf32>, vector<192x512xf32> -> vector<192x512xf32>
    %c1_17 = arith.constant 1 : index
    %c0_18 = arith.constant 0 : index
    %c0_19 = arith.constant 0 : index
    %33 = vector.load %arg4[%c1_17, %c0_18, %c0_19] : memref<2x192x1xf32, #tpu.memory_space<vmem>>, vector<1x192x1xf32>
    %34 = vector.shape_cast %33 : vector<1x192x1xf32> to vector<192x1xf32>
    %35 = vector.broadcast %34 : vector<192x1xf32> to vector<192x512xf32>
    %36 = arith.addf %32, %35 : vector<192x512xf32>
    %37 = vector.extract_strided_slice %36 {offsets = [0, 0], sizes = [128, 512], strides = [1, 1]} : vector<192x512xf32> to vector<128x512xf32>
    %cst_20 = arith.constant 5.000000e-01 : f32
    %38 = vector.broadcast %cst_20 : f32 to vector<128x512xf32>
    %39 = arith.mulf %38, %37 : vector<128x512xf32>
    %40 = math.tanh %39 : vector<128x512xf32>
    %cst_21 = arith.constant 5.000000e-01 : f32
    %41 = vector.broadcast %cst_21 : f32 to vector<128x512xf32>
    %42 = arith.mulf %41, %40 : vector<128x512xf32>
    %cst_22 = arith.constant 5.000000e-01 : f32
    %43 = vector.broadcast %cst_22 : f32 to vector<128x512xf32>
    %44 = arith.addf %42, %43 : vector<128x512xf32>
    %45 = vector.extract_strided_slice %36 {offsets = [128, 0], sizes = [64, 512], strides = [1, 1]} : vector<192x512xf32> to vector<64x512xf32>
    %46 = math.tanh %45 : vector<64x512xf32>
    %47 = vector.extract_strided_slice %44 {offsets = [0, 0], sizes = [64, 512], strides = [1, 1]} : vector<128x512xf32> to vector<64x512xf32>
    %48 = vector.extract_strided_slice %44 {offsets = [64, 0], sizes = [64, 512], strides = [1, 1]} : vector<128x512xf32> to vector<64x512xf32>
    %49 = arith.mulf %47, %46 : vector<64x512xf32>
    %50 = math.tanh %49 : vector<64x512xf32>
    %51 = arith.mulf %48, %50 : vector<64x512xf32>
    %c0_23 = arith.constant 0 : index
    %c0_24 = arith.constant 0 : index
    %52 = vector.load %arg5[%c0_23, %c0_24] : memref<2x64xf32, #tpu.memory_space<vmem>>, vector<2x64xf32>
    %cst_25 = arith.constant dense<0.000000e+00> : vector<2x512xf32>
    %53 = tpu.matmul %52, %51, %cst_25 {dimension_numbers = #tpu.dot_dimension_numbers<[1], [0], [0], [1], [0, 0, 1, 1], [], []>} : vector<2x64xf32>, vector<64x512xf32>, vector<2x512xf32> -> vector<2x512xf32>
    %c0_26 = arith.constant 0 : index
    %c0_27 = arith.constant 0 : index
    %54 = vector.load %arg6[%c0_26, %c0_27] : memref<2x1xf32, #tpu.memory_space<vmem>>, vector<2x1xf32>
    %55 = vector.broadcast %54 : vector<2x1xf32> to vector<2x512xf32>
    %56 = arith.addf %53, %55 : vector<2x512xf32>
    %c0_28 = arith.constant 0 : index
    %c0_29 = arith.constant 0 : index
    %57 = vector.load %arg7[%c0_28, %c0_29] : memref<2x512xf32, #tpu.memory_space<vmem>>, vector<2x512xf32>
    tpu.vector_store %arg7[%c0_28, %c0_29], %56 {strides = array<i32>} : memref<2x512xf32, #tpu.memory_space<vmem>>, vector<2x512xf32>,
    return
  }
  func.func @transform_0(%arg0: i32) -> (i32, i32) {
    %c0_i32 = arith.constant 0 : i32
    %c0_i32_0 = arith.constant 0 : i32
    return %c0_i32, %arg0 : i32, i32
  }
  func.func @transform_1(%arg0: i32) -> (i32, i32) {
    %c0_i32 = arith.constant 0 : i32
    %c0_i32_0 = arith.constant 0 : i32
    %c0_i32_1 = arith.constant 0 : i32
    return %c0_i32, %c0_i32_0 : i32, i32
  }
  func.func @transform_2(%arg0: i32) -> (i32, i32, i32) {
    %c0_i32 = arith.constant 0 : i32
    %c0_i32_0 = arith.constant 0 : i32
    %c0_i32_1 = arith.constant 0 : i32
    %c0_i32_2 = arith.constant 0 : i32
    return %c0_i32, %c0_i32_0, %c0_i32_1 : i32, i32, i32
  }
  func.func @transform_3(%arg0: i32) -> (i32, i32, i32) {
    %c0_i32 = arith.constant 0 : i32
    %c0_i32_0 = arith.constant 0 : i32
    %c0_i32_1 = arith.constant 0 : i32
    %c0_i32_2 = arith.constant 0 : i32
    return %c0_i32, %c0_i32_0, %c0_i32_1 : i32, i32, i32
  }
  func.func @transform_4(%arg0: i32) -> (i32, i32) {
    %c0_i32 = arith.constant 0 : i32
    %c0_i32_0 = arith.constant 0 : i32
    %c0_i32_1 = arith.constant 0 : i32
    return %c0_i32, %c0_i32_0 : i32, i32
  }
  func.func @transform_5(%arg0: i32) -> (i32, i32) {
    %c0_i32 = arith.constant 0 : i32
    %c0_i32_0 = arith.constant 0 : i32
    %c0_i32_1 = arith.constant 0 : i32
    return %c0_i32, %c0_i32_0 : i32, i32
  }
  func.func @transform_6(%arg0: i32) -> (i32, i32) {
    %c0_i32 = arith.constant 0 : i32
    %c0_i32_0 = arith.constant 0 : i32
    return %c0_i32, %arg0 : i32, i32
  }
}

</mosaic_0001>

<llo_original>
// kernel: tpu_custom_call.1
$region0: #{tpu_custom_call.1}
  #allocation0 [shape = 'u32[]', space=smem, size = 0x4, offset = 0x4, fixed_abs, tag = 'smem constant byte address 0x4 - core index']
  #allocation1 [shape = 'u32[72,128]{1,0:T(1,128)}', space=vmem, size = 0x9000, scoped, tag = 'internal scratch']
  %s0 = inlined_call_operand.vmem [shape: f32[1,1024], index: 0, kind: input, shape index: {}]
  %s1 = inlined_call_operand.vmem [shape: f32[64,2], index: 1, kind: input, shape index: {}]
  %s2 = inlined_call_operand.vmem [shape: f32[2,192,64], index: 2, kind: input, shape index: {}]
  %s3 = inlined_call_operand.vmem [shape: f32[2,192,1], index: 3, kind: input, shape index: {}]
  %s4 = inlined_call_operand.vmem [shape: f32[2,64], index: 4, kind: input, shape index: {}]
  %s5 = inlined_call_operand.vmem [shape: f32[2,1], index: 5, kind: input, shape index: {}]
  %s6 = inlined_call_operand.hbm [shape: f32[2,1024], index: 6, kind: output, shape index: {}]
  %s7 = sld [smem:[#allocation0]]
  $region57: #{tpu_custom_call.1} parent=0
    _
  %s9 = ssub.s32 1, %s7
  %s10 = scalar_select 0, %s9, %s7
  $region1: #{tpu_custom_call.1} parent=0
    #allocation2 [shape = 'u8[8192]{0}', space=vmem, size = 0x2000, scoped, tag = 'output window, operand 0']
    #allocation3 [shape = 's32[2]{0}', space=sflag, size = 0x8, scoped, tag = 'scoped memory for tpu_custom_call.1']
    %11 = vsyncpa [#allocation3], 0
    %s12 = scalar_lea.sflag [#allocation3], 1
    %13 = vsyncpa %s12, 0
    loop: start=0, step=1, limit=4
    $region2: #{tpu_custom_call.1} parent=1 // loop_pre_header
      _
    $region3: #{tpu_custom_call.1} parent=1 // loop_header
      %s15 = sphi 0, %s19
      %p16 = scmp.ge.s32.totalorder %s15, 4
      %s25 = sphi 0, %s27
      %s28 = sphi 0, %s25
      %s29 = sphi 0, %s28
      %s45 = sphi 0, %s29
      %s49 = sphi 0, %s49
      %s51 = sphi 0, %s49
      %s52 = sphi 0, %s51
      %s66 = sphi 0, %s52
      %s70 = sphi 0, %s70
      %s72 = sphi 0, %s70
      %s73 = sphi 0, %s72
      %s87 = sphi 0, %s73
      %s91 = sphi 0, %s91
      %s93 = sphi 0, %s91
      %s94 = sphi 0, %s93
      %s108 = sphi 0, %s94
      %s112 = sphi 0, %s112
      %s114 = sphi 0, %s112
      %s115 = sphi 0, %s114
      %s129 = sphi 0, %s115
      %s133 = sphi 0, %s133
      %s135 = sphi 0, %s133
      %s136 = sphi 0, %s135
      %s150 = sphi 0, %s136
      %s156 = sphi 0, %s158
      %s159 = sphi 0, %s156
      %s160 = sphi 0, %s159
      %s176 = sphi 0, %s160
    $region4: #{tpu_custom_call.1} parent=1 // loop_header_branch
      %18 = sbr.rel (%p16) target = $region8
    $region5: #{tpu_custom_call.1} parent=1 // loop_body
      %s20 = ssub.s32 %s15, 1
      %s21 = ssub.s32 %s15, 2
      %s22 = sadd.s32 %s15, 1
      %s23 = ssub.s32 %s15, %s22
      %p24 = scmp.eq.s32.totalorder %s23, 0
      %s26 = sadd.s32 %s25, 1
      %s27 = scalar_select %p24, %s25, %s26
      %p30 = pneg %p24
      %p31 = scmp.eq.s32.totalorder %s15, 1
      %p32 = por %p30, %p31
      %p33 = scmp.ne.s32.totalorder %s25, %s28
      %p34 = scmp.eq.s32.totalorder %s15, 0
      %p35 = por %p33, %p34
      %p36 = scmp.ne.s32.totalorder %s25, %s28
      %p37 = scmp.eq.s32.totalorder %s20, 1
      %p38 = por %p36, %p37
      %p39 = scmp.ne.s32.totalorder %s28, %s29
      %p40 = scmp.eq.s32.totalorder %s20, 0
      %p41 = por %p39, %p40
      %p42 = scmp.ne.s32.totalorder %s28, %s29
      %p43 = scmp.eq.s32.totalorder %s21, 1
      %p44 = por %p42, %p43
      %p46 = scmp.ne.s32.totalorder %s29, %s45
      %p47 = scmp.eq.s32.totalorder %s21, 0
      %p48 = por %p46, %p47
      %s50 = sadd.s32 %s49, 1
      %p53 = scmp.eq.s32.totalorder %s15, 1
      %p54 = scmp.ne.s32.totalorder %s49, %s51
      %p55 = scmp.eq.s32.totalorder %s15, 0
      %p56 = por %p54, %p55
      %p57 = scmp.ne.s32.totalorder %s49, %s51
      %p58 = scmp.eq.s32.totalorder %s20, 1
      %p59 = por %p57, %p58
      %p60 = scmp.ne.s32.totalorder %s51, %s52
      %p61 = scmp.eq.s32.totalorder %s20, 0
      %p62 = por %p60, %p61
      %p63 = scmp.ne.s32.totalorder %s51, %s52
      %p64 = scmp.eq.s32.totalorder %s21, 1
      %p65 = por %p63, %p64
      %p67 = scmp.ne.s32.totalorder %s52, %s66
      %p68 = scmp.eq.s32.totalorder %s21, 0
      %p69 = por %p67, %p68
      %s71 = sadd.s32 %s70, 1
      %p74 = scmp.eq.s32.totalorder %s15, 1
      %p75 = scmp.ne.s32.totalorder %s70, %s72
      %p76 = scmp.eq.s32.totalorder %s15, 0
      %p77 = por %p75, %p76
      %p78 = scmp.ne.s32.totalorder %s70, %s72
      %p79 = scmp.eq.s32.totalorder %s20, 1
      %p80 = por %p78, %p79
      %p81 = scmp.ne.s32.totalorder %s72, %s73
      %p82 = scmp.eq.s32.totalorder %s20, 0
      %p83 = por %p81, %p82
      %p84 = scmp.ne.s32.totalorder %s72, %s73
      %p85 = scmp.eq.s32.totalorder %s21, 1
      %p86 = por %p84, %p85
      %p88 = scmp.ne.s32.totalorder %s73, %s87
      %p89 = scmp.eq.s32.totalorder %s21, 0
      %p90 = por %p88, %p89
      %s92 = sadd.s32 %s91, 1
      %p95 = scmp.eq.s32.totalorder %s15, 1
      %p96 = scmp.ne.s32.totalorder %s91, %s93
      %p97 = scmp.eq.s32.totalorder %s15, 0
      %p98 = por %p96, %p97
      %p99 = scmp.ne.s32.totalorder %s91, %s93
      %p100 = scmp.eq.s32.totalorder %s20, 1
      %p101 = por %p99, %p100
      %p102 = scmp.ne.s32.totalorder %s93, %s94
      %p103 = scmp.eq.s32.totalorder %s20, 0
      %p104 = por %p102, %p103
      %p105 = scmp.ne.s32.totalorder %s93, %s94
      %p106 = scmp.eq.s32.totalorder %s21, 1
      %p107 = por %p105, %p106
      %p109 = scmp.ne.s32.totalorder %s94, %s108
      %p110 = scmp.eq.s32.totalorder %s21, 0
      %p111 = por %p109, %p110
      %s113 = sadd.s32 %s112, 1
      %p116 = scmp.eq.s32.totalorder %s15, 1
      %p117 = scmp.ne.s32.totalorder %s112, %s114
      %p118 = scmp.eq.s32.totalorder %s15, 0
      %p119 = por %p117, %p118
      %p120 = scmp.ne.s32.totalorder %s112, %s114
      %p121 = scmp.eq.s32.totalorder %s20, 1
      %p122 = por %p120, %p121
      %p123 = scmp.ne.s32.totalorder %s114, %s115
      %p124 = scmp.eq.s32.totalorder %s20, 0
      %p125 = por %p123, %p124
      %p126 = scmp.ne.s32.totalorder %s114, %s115
      %p127 = scmp.eq.s32.totalorder %s21, 1
      %p128 = por %p126, %p127
      %p130 = scmp.ne.s32.totalorder %s115, %s129
      %p131 = scmp.eq.s32.totalorder %s21, 0
      %p132 = por %p130, %p131
      %s134 = sadd.s32 %s133, 1
      %p137 = scmp.eq.s32.totalorder %s15, 1
      %p138 = scmp.ne.s32.totalorder %s133, %s135
      %p139 = scmp.eq.s32.totalorder %s15, 0
      %p140 = por %p138, %p139
      %p141 = scmp.ne.s32.totalorder %s133, %s135
      %p142 = scmp.eq.s32.totalorder %s20, 1
      %p143 = por %p141, %p142
      %p144 = scmp.ne.s32.totalorder %s135, %s136
      %p145 = scmp.eq.s32.totalorder %s20, 0
      %p146 = por %p144, %p145
      %p147 = scmp.ne.s32.totalorder %s135, %s136
      %p148 = scmp.eq.s32.totalorder %s21, 1
      %p149 = por %p147, %p148
      %p151 = scmp.ne.s32.totalorder %s136, %s150
      %p152 = scmp.eq.s32.totalorder %s21, 0
      %p153 = por %p151, %p152
      %s154 = ssub.s32 %s15, %s22
      %p155 = scmp.eq.s32.totalorder %s154, 0
      %s157 = sadd.s32 %s156, 1
      %s158 = scalar_select %p155, %s156, %s157
      %p161 = pneg %p155
      %p162 = scmp.eq.s32.totalorder %s15, 1
      %p163 = por %p161, %p162
      %p164 = scmp.ne.s32.totalorder %s156, %s159
      %p165 = scmp.eq.s32.totalorder %s15, 0
      %p166 = por %p164, %p165
      %p167 = scmp.ne.s32.totalorder %s156, %s159
      %p168 = scmp.eq.s32.totalorder %s20, 1
      %p169 = por %p167, %p168
      %p170 = scmp.ne.s32.totalorder %s159, %s160
      %p171 = scmp.eq.s32.totalorder %s20, 0
      %p172 = por %p170, %p171
      %p173 = scmp.ne.s32.totalorder %s159, %s160
      %p174 = scmp.eq.s32.totalorder %s21, 1
      %p175 = por %p173, %p174
      %p177 = scmp.ne.s32.totalorder %s160, %s176
      %p178 = scmp.eq.s32.totalorder %s21, 0
      %p179 = por %p177, %p178
      %p180 = scmp.le.s32.totalorder 1, %s15
      %p181 = scmp.lt.s32.totalorder %s15, 3
      %p182 = pnand %p180, %p181
      %p183 = pneg %p182
      // Predicated region
      $region9: #{tpu_custom_call.1} parent=5 // pred_check
        _
      $region10: #{tpu_custom_call.1} parent=5 // pred_check_branch
        %185 = sbr.rel (%p182) target = $region12
      $region11: #{tpu_custom_call.1} parent=5 // pred_region
        %s186 = ssub.s32 %s15, 1
        // Predicated region
        $region13: #{tpu_custom_call.1} parent=11 // pred_check
          %p187 = pneg %p62
        $region14: #{tpu_custom_call.1} parent=11 // pred_check_branch
          %189 = sbr.rel (%p187) target = $region16
        $region15: #{tpu_custom_call.1} parent=11 // pred_region
          _
        $region16: #{tpu_custom_call.1} parent=11 // pred_fallthru
          _
        // Predicated region
        $region17: #{tpu_custom_call.1} parent=11 // pred_check
          %p190 = pneg %p83
        $region18: #{tpu_custom_call.1} parent=11 // pred_check_branch
          %192 = sbr.rel (%p190) target = $region20
        $region19: #{tpu_custom_call.1} parent=11 // pred_region
          _
        $region20: #{tpu_custom_call.1} parent=11 // pred_fallthru
          _
        // Predicated region
        $region21: #{tpu_custom_call.1} parent=11 // pred_check
          %p193 = pneg %p104
        $region22: #{tpu_custom_call.1} parent=11 // pred_check_branch
          %195 = sbr.rel (%p193) target = $region24
        $region23: #{tpu_custom_call.1} parent=11 // pred_region
          _
        $region24: #{tpu_custom_call.1} parent=11 // pred_fallthru
          _
        // Predicated region
        $region25: #{tpu_custom_call.1} parent=11 // pred_check
          %p196 = pneg %p125
        $region26: #{tpu_custom_call.1} parent=11 // pred_check_branch
          %198 = sbr.rel (%p196) target = $region28
        $region27: #{tpu_custom_call.1} parent=11 // pred_region
          _
        $region28: #{tpu_custom_call.1} parent=11 // pred_fallthru
          _
        // Predicated region
        $region29: #{tpu_custom_call.1} parent=11 // pred_check
          %p199 = pneg %p146
        $region30: #{tpu_custom_call.1} parent=11 // pred_check_branch
          %201 = sbr.rel (%p199) target = $region32
        $region31: #{tpu_custom_call.1} parent=11 // pred_region
          _
        $region32: #{tpu_custom_call.1} parent=11 // pred_fallthru
          _
      $region12: #{tpu_custom_call.1} parent=5 // pred_fallthru
        _
      %p202 = scmp.lt.s32.totalorder %s15, 2
      // Predicated region
      $region33: #{tpu_custom_call.1} parent=5 // pred_check
        %p203 = pneg %p202
      $region34: #{tpu_custom_call.1} parent=5 // pred_check_branch
        %205 = sbr.rel (%p203) target = $region36
      $region35: #{tpu_custom_call.1} parent=5 // pred_region
        // Predicated region
        $region37: #{tpu_custom_call.1} parent=35 // pred_check
          %p206 = pneg %p35
        $region38: #{tpu_custom_call.1} parent=35 // pred_check_branch
          %208 = sbr.rel (%p206) target = $region40
        $region39: #{tpu_custom_call.1} parent=35 // pred_region
          %s209 = smul.u32 4, %s15
          %p210 = scmp.lt.s32.totalorder %s209, 7
          %s211 = scalar_select %p210, %s209, 7
          %s212 = scalar_lea.vmem %s0, %s211
          %s213 = smul.u32 4, %s15
        $region40: #{tpu_custom_call.1} parent=35 // pred_fallthru
          _
      $region36: #{tpu_custom_call.1} parent=5 // pred_fallthru
        _
      %p214 = scmp.le.s32.totalorder 1, %s15
      %p215 = scmp.lt.s32.totalorder %s15, 3
      %p216 = pnand %p214, %p215
      %p217 = pneg %p216
      // Predicated region
      $region41: #{tpu_custom_call.1} parent=5 // pred_check
        _
      $region42: #{tpu_custom_call.1} parent=5 // pred_check_branch
        %219 = sbr.rel (%p216) target = $region44
      $region43: #{tpu_custom_call.1} parent=5 // pred_region
        %s220 = ssub.s32 %s15, 1
        %s221 = smul.u32 4, %s20
        %p222 = scmp.lt.s32.totalorder %s221, 7
        %s223 = scalar_select %p222, %s221, 7
        %s224 = scalar_lea.vmem %s0, %s223
        %p225 = pneg %p41
        %p226 = pneg %p38
        %p227 = pneg %p62
        %p228 = pneg %p59
        %p229 = pneg %p83
        %p230 = pneg %p80
        %p231 = pneg %p104
        %p232 = pneg %p101
        %p233 = pneg %p125
        %p234 = pneg %p122
        %p235 = pneg %p146
        %p236 = pneg %p143
        %p237 = pneg %p172
        %p238 = pneg %p169
        %s239 = sand.u32 %s159, 1
        %s240 = scalar_lea.sflag [#allocation3], %s239
        %s241 = sand.u32 %s159, 1
        %s242 = smul.addr %s241, 8
        %s243 = scalar_lea.vmem [#allocation2], %s242
        %s244 = smul.u32 4, %s20
        %p245 = scmp.lt.s32.totalorder %s244, 7
        %s246 = scalar_select %p245, %s244, 7
        %s247 = scalar_lea.vmem %s0, %s246
        %s248 = smul.u32 4, %s20
        %s249 = smul.u32 4, %s20
        %v250 = vld [vmem:[%s247] sm:$0xf]
        %v251 = vld [vmem:[%s1] sm:$0xff]
        %v252 = vld [vmem:[%s1 + $0x8] sm:$0xff]
        %v253 = vld [vmem:[%s1 + $0x10] sm:$0xff]
        %v254 = vld [vmem:[%s1 + $0x18] sm:$0xff]
        %v255 = vld [vmem:[%s1 + $0x20] sm:$0xff]
        %v256 = vld [vmem:[%s1 + $0x28] sm:$0xff]
        %v257 = vld [vmem:[%s1 + $0x30] sm:$0xff]
        %v258 = vld [vmem:[%s1 + $0x38] sm:$0xff]
        %260 = vset.pattern.permute.xlu0 0
        %261 = vperm.xlu0 %260, %v251
        %v262 = vpop.permute.xlu0 %261
        %265 = vset.pattern.permute.xlu0 0
        %266 = vperm.xlu0 %265, %v252
        %v267 = vpop.permute.xlu0 %266
        %270 = vset.pattern.permute.xlu0 0
        %271 = vperm.xlu0 %270, %v253
        %v272 = vpop.permute.xlu0 %271
        %275 = vset.pattern.permute.xlu0 0
        %276 = vperm.xlu0 %275, %v254
        %v277 = vpop.permute.xlu0 %276
        %280 = vset.pattern.permute.xlu0 0
        %281 = vperm.xlu0 %280, %v255
        %v282 = vpop.permute.xlu0 %281
        %285 = vset.pattern.permute.xlu0 0
        %286 = vperm.xlu0 %285, %v256
        %v287 = vpop.permute.xlu0 %286
        %290 = vset.pattern.permute.xlu0 0
        %291 = vperm.xlu0 %290, %v257
        %v292 = vpop.permute.xlu0 %291
        %295 = vset.pattern.permute.xlu0 0
        %296 = vperm.xlu0 %295, %v258
        %v297 = vpop.permute.xlu0 %296
        %v300 = vperm.slane %v250, 0
        %v301 = vperm.slane %v250, 1
        %v302 = vperm.slane %v250, 2
        %v303 = vperm.slane %v250, 3
        %v308 = vmul.f32 %v262, %v300
        %v309 = vmul.f32 %v262, %v301
        %v310 = vmul.f32 %v262, %v302
        %v311 = vmul.f32 %v262, %v303
        %v312 = vmul.f32 %v267, %v300
        %v313 = vmul.f32 %v267, %v301
        %v314 = vmul.f32 %v267, %v302
        %v315 = vmul.f32 %v267, %v303
        %v316 = vmul.f32 %v272, %v300
        %v317 = vmul.f32 %v272, %v301
        %v318 = vmul.f32 %v272, %v302
        %v319 = vmul.f32 %v272, %v303
        %v320 = vmul.f32 %v277, %v300
        %v321 = vmul.f32 %v277, %v301
        %v322 = vmul.f32 %v277, %v302
        %v323 = vmul.f32 %v277, %v303
        %v324 = vmul.f32 %v282, %v300
        %v325 = vmul.f32 %v282, %v301
        %v326 = vmul.f32 %v282, %v302
        %v327 = vmul.f32 %v282, %v303
        %v328 = vmul.f32 %v287, %v300
        %v329 = vmul.f32 %v287, %v301
        %v330 = vmul.f32 %v287, %v302
        %v331 = vmul.f32 %v287, %v303
        %v332 = vmul.f32 %v292, %v300
        %v333 = vmul.f32 %v292, %v301
        %v334 = vmul.f32 %v292, %v302
        %v335 = vmul.f32 %v292, %v303
        %v336 = vmul.f32 %v297, %v300
        %v337 = vmul.f32 %v297, %v301
        %v338 = vmul.f32 %v297, %v302
        %v339 = vmul.f32 %v297, %v303
        %340 = vset.pattern.permute.xlu0 1
        %341 = vperm.xlu0 %340, %v251
        %v342 = vpop.permute.xlu0 %341
        %344 = vset.pattern.permute.xlu0 1
        %345 = vperm.xlu0 %344, %v252
        %v346 = vpop.permute.xlu0 %345
        %348 = vset.pattern.permute.xlu0 1
        %349 = vperm.xlu0 %348, %v253
        %v350 = vpop.permute.xlu0 %349
        %352 = vset.pattern.permute.xlu0 1
        %353 = vperm.xlu0 %352, %v254
        %v354 = vpop.permute.xlu0 %353
        %356 = vset.pattern.permute.xlu0 1
        %357 = vperm.xlu0 %356, %v255
        %v358 = vpop.permute.xlu0 %357
        %360 = vset.pattern.permute.xlu0 1
        %361 = vperm.xlu0 %360, %v256
        %v362 = vpop.permute.xlu0 %361
        %364 = vset.pattern.permute.xlu0 1
        %365 = vperm.xlu0 %364, %v257
        %v366 = vpop.permute.xlu0 %365
        %368 = vset.pattern.permute.xlu0 1
        %369 = vperm.xlu0 %368, %v258
        %v370 = vpop.permute.xlu0 %369
        %v372 = vadd.f32 %v308, %v342
        %v373 = vadd.f32 %v309, %v342
        %v374 = vadd.f32 %v310, %v342
        %v375 = vadd.f32 %v311, %v342
        %v376 = vadd.f32 %v312, %v346
        %v377 = vadd.f32 %v313, %v346
        %v378 = vadd.f32 %v314, %v346
        %v379 = vadd.f32 %v315, %v346
        %v380 = vadd.f32 %v316, %v350
        %v381 = vadd.f32 %v317, %v350
        %v382 = vadd.f32 %v318, %v350
        %v383 = vadd.f32 %v319, %v350
        %v384 = vadd.f32 %v320, %v354
        %v385 = vadd.f32 %v321, %v354
        %v386 = vadd.f32 %v322, %v354
        %v387 = vadd.f32 %v323, %v354
        %v388 = vadd.f32 %v324, %v358
        %v389 = vadd.f32 %v325, %v358
        %v390 = vadd.f32 %v326, %v358
        %v391 = vadd.f32 %v327, %v358
        %v392 = vadd.f32 %v328, %v362
        %v393 = vadd.f32 %v329, %v362
        %v394 = vadd.f32 %v330, %v362
        %v395 = vadd.f32 %v331, %v362
        %v396 = vadd.f32 %v332, %v366
        %v397 = vadd.f32 %v333, %v366
        %v398 = vadd.f32 %v334, %v366
        %v399 = vadd.f32 %v335, %v366
        %v400 = vadd.f32 %v336, %v370
        %v401 = vadd.f32 %v337, %v370
        %v402 = vadd.f32 %v338, %v370
        %v403 = vadd.f32 %v339, %v370
        %v404 = vld [vmem:[%s2] sm:$0xff]
        %v405 = vld [vmem:[%s2 + $0x8] sm:$0xff]
        %v406 = vld [vmem:[%s2 + $0x10] sm:$0xff]
        %v407 = vld [vmem:[%s2 + $0x18] sm:$0xff]
        %v408 = vld [vmem:[%s2 + $0x20] sm:$0xff]
        %v409 = vld [vmem:[%s2 + $0x28] sm:$0xff]
        %v410 = vld [vmem:[%s2 + $0x30] sm:$0xff]
        %v411 = vld [vmem:[%s2 + $0x38] sm:$0xff]
        %v412 = vld [vmem:[%s2 + $0x40] sm:$0xff]
        %v413 = vld [vmem:[%s2 + $0x48] sm:$0xff]
        %v414 = vld [vmem:[%s2 + $0x50] sm:$0xff]
        %v415 = vld [vmem:[%s2 + $0x58] sm:$0xff]
        %v416 = vld [vmem:[%s2 + $0x60] sm:$0xff]
        %v417 = vld [vmem:[%s2 + $0x68] sm:$0xff]
        %v418 = vld [vmem:[%s2 + $0x70] sm:$0xff]
        %v419 = vld [vmem:[%s2 + $0x78] sm:$0xff]
        %v420 = vld [vmem:[%s2 + $0x80] sm:$0xff]
        %v421 = vld [vmem:[%s2 + $0x88] sm:$0xff]
        %v422 = vld [vmem:[%s2 + $0x90] sm:$0xff]
        %v423 = vld [vmem:[%s2 + $0x98] sm:$0xff]
        %v424 = vld [vmem:[%s2 + $0xa0] sm:$0xff]
        %v425 = vld [vmem:[%s2 + $0xa8] sm:$0xff]
        %v426 = vld [vmem:[%s2 + $0xb0] sm:$0xff]
        %v427 = vld [vmem:[%s2 + $0xb8] sm:$0xff]
        %v428 = vld [vmem:[%s3] sm:$0xff]
        %v429 = vld [vmem:[%s3 + $0x8] sm:$0xff]
        %v430 = vld [vmem:[%s3 + $0x10] sm:$0xff]
        %v431 = vld [vmem:[%s3 + $0x18] sm:$0xff]
        %v432 = vld [vmem:[%s3 + $0x20] sm:$0xff]
        %v433 = vld [vmem:[%s3 + $0x28] sm:$0xff]
        %v434 = vld [vmem:[%s3 + $0x30] sm:$0xff]
        %v435 = vld [vmem:[%s3 + $0x38] sm:$0xff]
        %v436 = vld [vmem:[%s3 + $0x40] sm:$0xff]
        %v437 = vld [vmem:[%s3 + $0x48] sm:$0xff]
        %v438 = vld [vmem:[%s3 + $0x50] sm:$0xff]
        %v439 = vld [vmem:[%s3 + $0x58] sm:$0xff]
        %v440 = vld [vmem:[%s3 + $0x60] sm:$0xff]
        %v441 = vld [vmem:[%s3 + $0x68] sm:$0xff]
        %v442 = vld [vmem:[%s3 + $0x70] sm:$0xff]
        %v443 = vld [vmem:[%s3 + $0x78] sm:$0xff]
        %v444 = vld [vmem:[%s3 + $0x80] sm:$0xff]
        %v445 = vld [vmem:[%s3 + $0x88] sm:$0xff]
        %v446 = vld [vmem:[%s3 + $0x90] sm:$0xff]
        %v447 = vld [vmem:[%s3 + $0x98] sm:$0xff]
        %v448 = vld [vmem:[%s3 + $0xa0] sm:$0xff]
        %v449 = vld [vmem:[%s3 + $0xa8] sm:$0xff]
        %v450 = vld [vmem:[%s3 + $0xb0] sm:$0xff]
        %v451 = vld [vmem:[%s3 + $0xb8] sm:$0xff]
        %453 = vset.pattern.permute.xlu0 0
        %454 = vperm.xlu0 %453, %v428
        %v455 = vpop.permute.xlu0 %454
        %458 = vset.pattern.permute.xlu0 0
        %459 = vperm.xlu0 %458, %v429
        %v460 = vpop.permute.xlu0 %459
        %463 = vset.pattern.permute.xlu0 0
        %464 = vperm.xlu0 %463, %v430
        %v465 = vpop.permute.xlu0 %464
        %468 = vset.pattern.permute.xlu0 0
        %469 = vperm.xlu0 %468, %v431
        %v470 = vpop.permute.xlu0 %469
        %473 = vset.pattern.permute.xlu0 0
        %474 = vperm.xlu0 %473, %v432
        %v475 = vpop.permute.xlu0 %474
        %478 = vset.pattern.permute.xlu0 0
        %479 = vperm.xlu0 %478, %v433
        %v480 = vpop.permute.xlu0 %479
        %483 = vset.pattern.permute.xlu0 0
        %484 = vperm.xlu0 %483, %v434
        %v485 = vpop.permute.xlu0 %484
        %488 = vset.pattern.permute.xlu0 0
        %489 = vperm.xlu0 %488, %v435
        %v490 = vpop.permute.xlu0 %489
        %493 = vset.pattern.permute.xlu0 0
        %494 = vperm.xlu0 %493, %v436
        %v495 = vpop.permute.xlu0 %494
        %498 = vset.pattern.permute.xlu0 0
        %499 = vperm.xlu0 %498, %v437
        %v500 = vpop.permute.xlu0 %499
        %503 = vset.pattern.permute.xlu0 0
        %504 = vperm.xlu0 %503, %v438
        %v505 = vpop.permute.xlu0 %504
        %508 = vset.pattern.permute.xlu0 0
        %509 = vperm.xlu0 %508, %v439
        %v510 = vpop.permute.xlu0 %509
        %513 = vset.pattern.permute.xlu0 0
        %514 = vperm.xlu0 %513, %v440
        %v515 = vpop.permute.xlu0 %514
        %518 = vset.pattern.permute.xlu0 0
        %519 = vperm.xlu0 %518, %v441
        %v520 = vpop.permute.xlu0 %519
        %523 = vset.pattern.permute.xlu0 0
        %524 = vperm.xlu0 %523, %v442
        %v525 = vpop.permute.xlu0 %524
        %528 = vset.pattern.permute.xlu0 0
        %529 = vperm.xlu0 %528, %v443
        %v530 = vpop.permute.xlu0 %529
        %533 = vset.pattern.permute.xlu0 0
        %534 = vperm.xlu0 %533, %v444
        %v535 = vpop.permute.xlu0 %534
        %538 = vset.pattern.permute.xlu0 0
        %539 = vperm.xlu0 %538, %v445
        %v540 = vpop.permute.xlu0 %539
        %543 = vset.pattern.permute.xlu0 0
        %544 = vperm.xlu0 %543, %v446
        %v545 = vpop.permute.xlu0 %544
        %548 = vset.pattern.permute.xlu0 0
        %549 = vperm.xlu0 %548, %v447
        %v550 = vpop.permute.xlu0 %549
        %553 = vset.pattern.permute.xlu0 0
        %554 = vperm.xlu0 %553, %v448
        %v555 = vpop.permute.xlu0 %554
        %558 = vset.pattern.permute.xlu0 0
        %559 = vperm.xlu0 %558, %v449
        %v560 = vpop.permute.xlu0 %559
        %563 = vset.pattern.permute.xlu0 0
        %564 = vperm.xlu0 %563, %v450
        %v565 = vpop.permute.xlu0 %564
        %568 = vset.pattern.permute.xlu0 0
        %569 = vperm.xlu0 %568, %v451
        %v570 = vpop.permute.xlu0 %569
        %vm572 = vcmask 523264
        %v574 = vsel %vm572, %v404, 0
        %v577 = vsel %vm572, %v405, 0
        %v580 = vsel %vm572, %v406, 0
        %v583 = vsel %vm572, %v407, 0
        %v586 = vsel %vm572, %v408, 0
        %v589 = vsel %vm572, %v409, 0
        %v592 = vsel %vm572, %v410, 0
        %v595 = vsel %vm572, %v411, 0
        %v598 = vsel %vm572, %v412, 0
        %v601 = vsel %vm572, %v413, 0
        %v604 = vsel %vm572, %v414, 0
        %v607 = vsel %vm572, %v415, 0
        %v610 = vsel %vm572, %v416, 0
        %v613 = vsel %vm572, %v417, 0
        %v616 = vsel %vm572, %v418, 0
        %v619 = vsel %vm572, %v419, 0
        %v622 = vsel %vm572, %v420, 0
        %v625 = vsel %vm572, %v421, 0
        %v628 = vsel %vm572, %v422, 0
        %v631 = vsel %vm572, %v423, 0
        %v634 = vsel %vm572, %v424, 0
        %v637 = vsel %vm572, %v425, 0
        %v640 = vsel %vm572, %v426, 0
        %v643 = vsel %vm572, %v427, 0
        %645 = vmatpush.msra.mxu0 0.0
        %646 = vmatpush.msra.mxu0 0.0
        %647 = vmatpush.msra.mxu0 0.0
        %648 = vmatpush.msra.mxu0 0.0
        %649 = vmatpush.msra.mxu0 0.0
        %650 = vmatpush.msra.mxu0 0.0
        %651 = vmatpush.msra.mxu0 0.0
        %652 = vmatpush.msra.mxu0 0.0
        %653 = vmatpush.msra.mxu0 %v400
        %654 = vmatpush.msra.mxu0 %v396
        %655 = vmatpush.msra.mxu0 %v392
        %656 = vmatpush.msra.mxu0 %v388
        %657 = vmatpush.msra.mxu0 %v384
        %658 = vmatpush.msra.mxu0 %v380
        %659 = vmatpush.msra.mxu0 %v376
        %660 = vmatpush.msra.mxu0 %v372
        %661 = vmatmul.f32.gmra.mxu0 %v574
        %v662 = vpop.f32.mrf.mxu0
        %v663 = vadd.f32 %v455, %v662
        %664 = vmatmul.f32.gmra.mxu0 %v577
        %v665 = vpop.f32.mrf.mxu0
        %v666 = vadd.f32 %v460, %v665
        %667 = vmatmul.f32.gmra.mxu0 %v580
        %v668 = vpop.f32.mrf.mxu0
        %v669 = vadd.f32 %v465, %v668
        %670 = vmatmul.f32.gmra.mxu0 %v583
        %v671 = vpop.f32.mrf.mxu0
        %v672 = vadd.f32 %v470, %v671
        %673 = vmatmul.f32.gmra.mxu0 %v586
        %v674 = vpop.f32.mrf.mxu0
        %v675 = vadd.f32 %v475, %v674
        %676 = vmatmul.f32.gmra.mxu0 %v589
        %v677 = vpop.f32.mrf.mxu0
        %v678 = vadd.f32 %v480, %v677
        %679 = vmatmul.f32.gmra.mxu0 %v592
        %v680 = vpop.f32.mrf.mxu0
        %v681 = vadd.f32 %v485, %v680
        %682 = vmatmul.f32.gmra.mxu0 %v595
        %v683 = vpop.f32.mrf.mxu0
        %v684 = vadd.f32 %v490, %v683
        %685 = vmatmul.f32.gmra.mxu0 %v598
        %v686 = vpop.f32.mrf.mxu0
        %v687 = vadd.f32 %v495, %v686
        %688 = vmatmul.f32.gmra.mxu0 %v601
        %v689 = vpop.f32.mrf.mxu0
        %v690 = vadd.f32 %v500, %v689
        %691 = vmatmul.f32.gmra.mxu0 %v604
        %v692 = vpop.f32.mrf.mxu0
        %v693 = vadd.f32 %v505, %v692
        %694 = vmatmul.f32.gmra.mxu0 %v607
        %v695 = vpop.f32.mrf.mxu0
        %v696 = vadd.f32 %v510, %v695
        %697 = vmatmul.f32.gmra.mxu0 %v610
        %v698 = vpop.f32.mrf.mxu0
        %v699 = vadd.f32 %v515, %v698
        %700 = vmatmul.f32.gmra.mxu0 %v613
        %v701 = vpop.f32.mrf.mxu0
        %v702 = vadd.f32 %v520, %v701
        %703 = vmatmul.f32.gmra.mxu0 %v616
        %v704 = vpop.f32.mrf.mxu0
        %v705 = vadd.f32 %v525, %v704
        %706 = vmatmul.f32.gmra.mxu0 %v619
        %v707 = vpop.f32.mrf.mxu0
        %v708 = vadd.f32 %v530, %v707
        %709 = vmatmul.f32.gmra.mxu0 %v622
        %v710 = vpop.f32.mrf.mxu0
        %v711 = vadd.f32 %v535, %v710
        %712 = vmatmul.f32.gmra.mxu0 %v625
        %v713 = vpop.f32.mrf.mxu0
        %v714 = vadd.f32 %v540, %v713
        %715 = vmatmul.f32.gmra.mxu0 %v628
        %v716 = vpop.f32.mrf.mxu0
        %v717 = vadd.f32 %v545, %v716
        %718 = vmatmul.f32.gmra.mxu0 %v631
        %v719 = vpop.f32.mrf.mxu0
        %v720 = vadd.f32 %v550, %v719
        %721 = vmatmul.f32.gmra.mxu0 %v634
        %v722 = vpop.f32.mrf.mxu0
        %v723 = vadd.f32 %v555, %v722
        %724 = vmatmul.f32.gmra.mxu0 %v637
        %v725 = vpop.f32.mrf.mxu0
        %v726 = vadd.f32 %v560, %v725
        %727 = vmatmul.f32.gmra.mxu0 %v640
        %v728 = vpop.f32.mrf.mxu0
        %v729 = vadd.f32 %v565, %v728
        %730 = vmatmul.f32.gmra.mxu0 %v643
        %v731 = vpop.f32.mrf.mxu0
        %v732 = vadd.f32 %v570, %v731
        %733 = vdwg.mxu0
        %734 = vmatpush.msra.mxu0 0.0
        %735 = vmatpush.msra.mxu0 0.0
        %736 = vmatpush.msra.mxu0 0.0
        %737 = vmatpush.msra.mxu0 0.0
        %738 = vmatpush.msra.mxu0 0.0
        %739 = vmatpush.msra.mxu0 0.0
        %740 = vmatpush.msra.mxu0 0.0
        %741 = vmatpush.msra.mxu0 0.0
        %742 = vmatpush.msra.mxu0 %v401
        %743 = vmatpush.msra.mxu0 %v397
        %744 = vmatpush.msra.mxu0 %v393
        %745 = vmatpush.msra.mxu0 %v389
        %746 = vmatpush.msra.mxu0 %v385
        %747 = vmatpush.msra.mxu0 %v381
        %748 = vmatpush.msra.mxu0 %v377
        %749 = vmatpush.msra.mxu0 %v373
        %750 = vmatmul.f32.gmra.mxu0 %v574
        %v751 = vpop.f32.mrf.mxu0
        %v752 = vadd.f32 %v455, %v751
        %753 = vmatmul.f32.gmra.mxu0 %v577
        %v754 = vpop.f32.mrf.mxu0
        %v755 = vadd.f32 %v460, %v754
        %756 = vmatmul.f32.gmra.mxu0 %v580
        %v757 = vpop.f32.mrf.mxu0
        %v758 = vadd.f32 %v465, %v757
        %759 = vmatmul.f32.gmra.mxu0 %v583
        %v760 = vpop.f32.mrf.mxu0
        %v761 = vadd.f32 %v470, %v760
        %762 = vmatmul.f32.gmra.mxu0 %v586
        %v763 = vpop.f32.mrf.mxu0
        %v764 = vadd.f32 %v475, %v763
        %765 = vmatmul.f32.gmra.mxu0 %v589
        %v766 = vpop.f32.mrf.mxu0
        %v767 = vadd.f32 %v480, %v766
        %768 = vmatmul.f32.gmra.mxu0 %v592
        %v769 = vpop.f32.mrf.mxu0
        %v770 = vadd.f32 %v485, %v769
        %771 = vmatmul.f32.gmra.mxu0 %v595
        %v772 = vpop.f32.mrf.mxu0
        %v773 = vadd.f32 %v490, %v772
        %774 = vmatmul.f32.gmra.mxu0 %v598
        %v775 = vpop.f32.mrf.mxu0
        %v776 = vadd.f32 %v495, %v775
        %777 = vmatmul.f32.gmra.mxu0 %v601
        %v778 = vpop.f32.mrf.mxu0
        %v779 = vadd.f32 %v500, %v778
        %780 = vmatmul.f32.gmra.mxu0 %v604
        %v781 = vpop.f32.mrf.mxu0
        %v782 = vadd.f32 %v505, %v781
        %783 = vmatmul.f32.gmra.mxu0 %v607
        %v784 = vpop.f32.mrf.mxu0
        %v785 = vadd.f32 %v510, %v784
        %786 = vmatmul.f32.gmra.mxu0 %v610
        %v787 = vpop.f32.mrf.mxu0
        %v788 = vadd.f32 %v515, %v787
        %789 = vmatmul.f32.gmra.mxu0 %v613
        %v790 = vpop.f32.mrf.mxu0
        %v791 = vadd.f32 %v520, %v790
        %792 = vmatmul.f32.gmra.mxu0 %v616
        %v793 = vpop.f32.mrf.mxu0
        %v794 = vadd.f32 %v525, %v793
        %795 = vmatmul.f32.gmra.mxu0 %v619
        %v796 = vpop.f32.mrf.mxu0
        %v797 = vadd.f32 %v530, %v796
        %798 = vmatmul.f32.gmra.mxu0 %v622
        %v799 = vpop.f32.mrf.mxu0
        %v800 = vadd.f32 %v535, %v799
        %801 = vmatmul.f32.gmra.mxu0 %v625
        %v802 = vpop.f32.mrf.mxu0
        %v803 = vadd.f32 %v540, %v802
        %804 = vmatmul.f32.gmra.mxu0 %v628
        %v805 = vpop.f32.mrf.mxu0
        %v806 = vadd.f32 %v545, %v805
        %807 = vmatmul.f32.gmra.mxu0 %v631
        %v808 = vpop.f32.mrf.mxu0
        %v809 = vadd.f32 %v550, %v808
        %810 = vmatmul.f32.gmra.mxu0 %v634
        %v811 = vpop.f32.mrf.mxu0
        %v812 = vadd.f32 %v555, %v811
        %813 = vmatmul.f32.gmra.mxu0 %v637
        %v814 = vpop.f32.mrf.mxu0
        %v815 = vadd.f32 %v560, %v814
        %816 = vmatmul.f32.gmra.mxu0 %v640
        %v817 = vpop.f32.mrf.mxu0
        %v818 = vadd.f32 %v565, %v817
        %819 = vmatmul.f32.gmra.mxu0 %v643
        %v820 = vpop.f32.mrf.mxu0
        %v821 = vadd.f32 %v570, %v820
        %822 = vdwg.mxu0
        %823 = vmatpush.msra.mxu0 0.0
        %824 = vmatpush.msra.mxu0 0.0
        %825 = vmatpush.msra.mxu0 0.0
        %826 = vmatpush.msra.mxu0 0.0
        %827 = vmatpush.msra.mxu0 0.0
        %828 = vmatpush.msra.mxu0 0.0
        %829 = vmatpush.msra.mxu0 0.0
        %830 = vmatpush.msra.mxu0 0.0
        %831 = vmatpush.msra.mxu0 %v402
        %832 = vmatpush.msra.mxu0 %v398
        %833 = vmatpush.msra.mxu0 %v394
        %834 = vmatpush.msra.mxu0 %v390
        %835 = vmatpush.msra.mxu0 %v386
        %836 = vmatpush.msra.mxu0 %v382
        %837 = vmatpush.msra.mxu0 %v378
        %838 = vmatpush.msra.mxu0 %v374
        %839 = vmatmul.f32.gmra.mxu0 %v574
        %v840 = vpop.f32.mrf.mxu0
        %v841 = vadd.f32 %v455, %v840
        %842 = vmatmul.f32.gmra.mxu0 %v577
        %v843 = vpop.f32.mrf.mxu0
        %v844 = vadd.f32 %v460, %v843
        %845 = vmatmul.f32.gmra.mxu0 %v580
        %v846 = vpop.f32.mrf.mxu0
        %v847 = vadd.f32 %v465, %v846
        %848 = vmatmul.f32.gmra.mxu0 %v583
        %v849 = vpop.f32.mrf.mxu0
        %v850 = vadd.f32 %v470, %v849
        %851 = vmatmul.f32.gmra.mxu0 %v586
        %v852 = vpop.f32.mrf.mxu0
        %v853 = vadd.f32 %v475, %v852
        %854 = vmatmul.f32.gmra.mxu0 %v589
        %v855 = vpop.f32.mrf.mxu0
        %v856 = vadd.f32 %v480, %v855
        %857 = vmatmul.f32.gmra.mxu0 %v592
        %v858 = vpop.f32.mrf.mxu0
        %v859 = vadd.f32 %v485, %v858
        %860 = vmatmul.f32.gmra.mxu0 %v595
        %v861 = vpop.f32.mrf.mxu0
        %v862 = vadd.f32 %v490, %v861
        %863 = vmatmul.f32.gmra.mxu0 %v598
        %v864 = vpop.f32.mrf.mxu0
        %v865 = vadd.f32 %v495, %v864
        %866 = vmatmul.f32.gmra.mxu0 %v601
        %v867 = vpop.f32.mrf.mxu0
        %v868 = vadd.f32 %v500, %v867
        %869 = vmatmul.f32.gmra.mxu0 %v604
        %v870 = vpop.f32.mrf.mxu0
        %v871 = vadd.f32 %v505, %v870
        %872 = vmatmul.f32.gmra.mxu0 %v607
        %v873 = vpop.f32.mrf.mxu0
        %v874 = vadd.f32 %v510, %v873
        %875 = vmatmul.f32.gmra.mxu0 %v610
        %v876 = vpop.f32.mrf.mxu0
        %v877 = vadd.f32 %v515, %v876
        %878 = vmatmul.f32.gmra.mxu0 %v613
        %v879 = vpop.f32.mrf.mxu0
        %v880 = vadd.f32 %v520, %v879
        %881 = vmatmul.f32.gmra.mxu0 %v616
        %v882 = vpop.f32.mrf.mxu0
        %v883 = vadd.f32 %v525, %v882
        %884 = vmatmul.f32.gmra.mxu0 %v619
        %v885 = vpop.f32.mrf.mxu0
        %v886 = vadd.f32 %v530, %v885
        %887 = vmatmul.f32.gmra.mxu0 %v622
        %v888 = vpop.f32.mrf.mxu0
        %v889 = vadd.f32 %v535, %v888
        %890 = vmatmul.f32.gmra.mxu0 %v625
        %v891 = vpop.f32.mrf.mxu0
        %v892 = vadd.f32 %v540, %v891
        %893 = vmatmul.f32.gmra.mxu0 %v628
        %v894 = vpop.f32.mrf.mxu0
        %v895 = vadd.f32 %v545, %v894
        %896 = vmatmul.f32.gmra.mxu0 %v631
        %v897 = vpop.f32.mrf.mxu0
        %v898 = vadd.f32 %v550, %v897
        %899 = vmatmul.f32.gmra.mxu0 %v634
        %v900 = vpop.f32.mrf.mxu0
        %v901 = vadd.f32 %v555, %v900
        %902 = vmatmul.f32.gmra.mxu0 %v637
        %v903 = vpop.f32.mrf.mxu0
        %v904 = vadd.f32 %v560, %v903
        %905 = vmatmul.f32.gmra.mxu0 %v640
        %v906 = vpop.f32.mrf.mxu0
        %v907 = vadd.f32 %v565, %v906
        %908 = vmatmul.f32.gmra.mxu0 %v643
        %v909 = vpop.f32.mrf.mxu0
        %v910 = vadd.f32 %v570, %v909
        %911 = vdwg.mxu0
        %912 = vmatpush.msra.mxu0 0.0
        %913 = vmatpush.msra.mxu0 0.0
        %914 = vmatpush.msra.mxu0 0.0
        %915 = vmatpush.msra.mxu0 0.0
        %916 = vmatpush.msra.mxu0 0.0
        %917 = vmatpush.msra.mxu0 0.0
        %918 = vmatpush.msra.mxu0 0.0
        %919 = vmatpush.msra.mxu0 0.0
        %920 = vmatpush.msra.mxu0 %v403
        %921 = vmatpush.msra.mxu0 %v399
        %922 = vmatpush.msra.mxu0 %v395
        %923 = vmatpush.msra.mxu0 %v391
        %924 = vmatpush.msra.mxu0 %v387
        %925 = vmatpush.msra.mxu0 %v383
        %926 = vmatpush.msra.mxu0 %v379
        %927 = vmatpush.msra.mxu0 %v375
        %928 = vmatmul.f32.gmra.mxu0 %v574
        %v929 = vpop.f32.mrf.mxu0
        %v930 = vadd.f32 %v455, %v929
        %931 = vmatmul.f32.gmra.mxu0 %v577
        %v932 = vpop.f32.mrf.mxu0
        %v933 = vadd.f32 %v460, %v932
        %934 = vmatmul.f32.gmra.mxu0 %v580
        %v935 = vpop.f32.mrf.mxu0
        %v936 = vadd.f32 %v465, %v935
        %937 = vmatmul.f32.gmra.mxu0 %v583
        %v938 = vpop.f32.mrf.mxu0
        %v939 = vadd.f32 %v470, %v938
        %940 = vmatmul.f32.gmra.mxu0 %v586
        %v941 = vpop.f32.mrf.mxu0
        %v942 = vadd.f32 %v475, %v941
        %943 = vmatmul.f32.gmra.mxu0 %v589
        %v944 = vpop.f32.mrf.mxu0
        %v945 = vadd.f32 %v480, %v944
        %946 = vmatmul.f32.gmra.mxu0 %v592
        %v947 = vpop.f32.mrf.mxu0
        %v948 = vadd.f32 %v485, %v947
        %949 = vmatmul.f32.gmra.mxu0 %v595
        %v950 = vpop.f32.mrf.mxu0
        %v951 = vadd.f32 %v490, %v950
        %952 = vmatmul.f32.gmra.mxu0 %v598
        %v953 = vpop.f32.mrf.mxu0
        %v954 = vadd.f32 %v495, %v953
        %955 = vmatmul.f32.gmra.mxu0 %v601
        %v956 = vpop.f32.mrf.mxu0
        %v957 = vadd.f32 %v500, %v956
        %958 = vmatmul.f32.gmra.mxu0 %v604
        %v959 = vpop.f32.mrf.mxu0
        %v960 = vadd.f32 %v505, %v959
        %961 = vmatmul.f32.gmra.mxu0 %v607
        %v962 = vpop.f32.mrf.mxu0
        %v963 = vadd.f32 %v510, %v962
        %964 = vmatmul.f32.gmra.mxu0 %v610
        %v965 = vpop.f32.mrf.mxu0
        %v966 = vadd.f32 %v515, %v965
        %967 = vmatmul.f32.gmra.mxu0 %v613
        %v968 = vpop.f32.mrf.mxu0
        %v969 = vadd.f32 %v520, %v968
        %970 = vmatmul.f32.gmra.mxu0 %v616
        %v971 = vpop.f32.mrf.mxu0
        %v972 = vadd.f32 %v525, %v971
        %973 = vmatmul.f32.gmra.mxu0 %v619
        %v974 = vpop.f32.mrf.mxu0
        %v975 = vadd.f32 %v530, %v974
        %976 = vmatmul.f32.gmra.mxu0 %v622
        %v977 = vpop.f32.mrf.mxu0
        %v978 = vadd.f32 %v535, %v977
        %979 = vmatmul.f32.gmra.mxu0 %v625
        %v980 = vpop.f32.mrf.mxu0
        %v981 = vadd.f32 %v540, %v980
        %982 = vmatmul.f32.gmra.mxu0 %v628
        %v983 = vpop.f32.mrf.mxu0
        %v984 = vadd.f32 %v545, %v983
        %985 = vmatmul.f32.gmra.mxu0 %v631
        %v986 = vpop.f32.mrf.mxu0
        %v987 = vadd.f32 %v550, %v986
        %988 = vmatmul.f32.gmra.mxu0 %v634
        %v989 = vpop.f32.mrf.mxu0
        %v990 = vadd.f32 %v555, %v989
        %991 = vmatmul.f32.gmra.mxu0 %v637
        %v992 = vpop.f32.mrf.mxu0
        %v993 = vadd.f32 %v560, %v992
        %994 = vmatmul.f32.gmra.mxu0 %v640
        %v995 = vpop.f32.mrf.mxu0
        %v996 = vadd.f32 %v565, %v995
        %997 = vmatmul.f32.gmra.mxu0 %v643
        %v998 = vpop.f32.mrf.mxu0
        %v999 = vadd.f32 %v570, %v998
        %1000 = vdwg.mxu0
        %v1001 = vmul.f32 %v663, 0.5
        %v1002 = vmul.f32 %v752, 0.5
        %v1003 = vmul.f32 %v841, 0.5
        %v1004 = vmul.f32 %v930, 0.5
        %v1005 = vmul.f32 %v666, 0.5
        %v1006 = vmul.f32 %v755, 0.5
        %v1007 = vmul.f32 %v844, 0.5
        %v1008 = vmul.f32 %v933, 0.5
        %v1009 = vmul.f32 %v669, 0.5
        %v1010 = vmul.f32 %v758, 0.5
        %v1011 = vmul.f32 %v847, 0.5
        %v1012 = vmul.f32 %v936, 0.5
        %v1013 = vmul.f32 %v672, 0.5
        %v1014 = vmul.f32 %v761, 0.5
        %v1015 = vmul.f32 %v850, 0.5
        %v1016 = vmul.f32 %v939, 0.5
        %v1017 = vmul.f32 %v675, 0.5
        %v1018 = vmul.f32 %v764, 0.5
        %v1019 = vmul.f32 %v853, 0.5
        %v1020 = vmul.f32 %v942, 0.5
        %v1021 = vmul.f32 %v678, 0.5
        %v1022 = vmul.f32 %v767, 0.5
        %v1023 = vmul.f32 %v856, 0.5
        %v1024 = vmul.f32 %v945, 0.5
        %v1025 = vmul.f32 %v681, 0.5
        %v1026 = vmul.f32 %v770, 0.5
        %v1027 = vmul.f32 %v859, 0.5
        %v1028 = vmul.f32 %v948, 0.5
        %v1029 = vmul.f32 %v684, 0.5
        %v1030 = vmul.f32 %v773, 0.5
        %v1031 = vmul.f32 %v862, 0.5
        %v1032 = vmul.f32 %v951, 0.5
        %v1033 = vmul.f32 %v687, 0.5
        %v1034 = vmul.f32 %v776, 0.5
        %v1035 = vmul.f32 %v865, 0.5
        %v1036 = vmul.f32 %v954, 0.5
        %v1037 = vmul.f32 %v690, 0.5
        %v1038 = vmul.f32 %v779, 0.5
        %v1039 = vmul.f32 %v868, 0.5
        %v1040 = vmul.f32 %v957, 0.5
        %v1041 = vmul.f32 %v693, 0.5
        %v1042 = vmul.f32 %v782, 0.5
        %v1043 = vmul.f32 %v871, 0.5
        %v1044 = vmul.f32 %v960, 0.5
        %v1045 = vmul.f32 %v696, 0.5
        %v1046 = vmul.f32 %v785, 0.5
        %v1047 = vmul.f32 %v874, 0.5
        %v1048 = vmul.f32 %v963, 0.5
        %v1049 = vmul.f32 %v699, 0.5
        %v1050 = vmul.f32 %v788, 0.5
        %v1051 = vmul.f32 %v877, 0.5
        %v1052 = vmul.f32 %v966, 0.5
        %v1053 = vmul.f32 %v702, 0.5
        %v1054 = vmul.f32 %v791, 0.5
        %v1055 = vmul.f32 %v880, 0.5
        %v1056 = vmul.f32 %v969, 0.5
        %v1057 = vmul.f32 %v705, 0.5
        %v1058 = vmul.f32 %v794, 0.5
        %v1059 = vmul.f32 %v883, 0.5
        %v1060 = vmul.f32 %v972, 0.5
        %v1061 = vmul.f32 %v708, 0.5
        %v1062 = vmul.f32 %v797, 0.5
        %v1063 = vmul.f32 %v886, 0.5
        %v1064 = vmul.f32 %v975, 0.5
        %v1065 = vtanh.pop %v1001
        %v1066 = vtanh.pop %v1002
        %v1067 = vtanh.pop %v1003
        %v1068 = vtanh.pop %v1004
        %v1069 = vtanh.pop %v1005
        %v1070 = vtanh.pop %v1006
        %v1071 = vtanh.pop %v1007
        %v1072 = vtanh.pop %v1008
        %v1073 = vtanh.pop %v1009
        %v1074 = vtanh.pop %v1010
        %v1075 = vtanh.pop %v1011
        %v1076 = vtanh.pop %v1012
        %v1077 = vtanh.pop %v1013
        %v1078 = vtanh.pop %v1014
        %v1079 = vtanh.pop %v1015
        %v1080 = vtanh.pop %v1016
        %v1081 = vtanh.pop %v1017
        %v1082 = vtanh.pop %v1018
        %v1083 = vtanh.pop %v1019
        %v1084 = vtanh.pop %v1020
        %v1085 = vtanh.pop %v1021
        %v1086 = vtanh.pop %v1022
        %v1087 = vtanh.pop %v1023
        %v1088 = vtanh.pop %v1024
        %v1089 = vtanh.pop %v1025
        %v1090 = vtanh.pop %v1026
        %v1091 = vtanh.pop %v1027
        %v1092 = vtanh.pop %v1028
        %v1093 = vtanh.pop %v1029
        %v1094 = vtanh.pop %v1030
        %v1095 = vtanh.pop %v1031
        %v1096 = vtanh.pop %v1032
        %v1097 = vtanh.pop %v1033
        %v1098 = vtanh.pop %v1034
        %v1099 = vtanh.pop %v1035
        %v1100 = vtanh.pop %v1036
        %v1101 = vtanh.pop %v1037
        %v1102 = vtanh.pop %v1038
        %v1103 = vtanh.pop %v1039
        %v1104 = vtanh.pop %v1040
        %v1105 = vtanh.pop %v1041
        %v1106 = vtanh.pop %v1042
        %v1107 = vtanh.pop %v1043
        %v1108 = vtanh.pop %v1044
        %v1109 = vtanh.pop %v1045
        %v1110 = vtanh.pop %v1046
        %v1111 = vtanh.pop %v1047
        %v1112 = vtanh.pop %v1048
        %v1113 = vtanh.pop %v1049
        %v1114 = vtanh.pop %v1050
        %v1115 = vtanh.pop %v1051
        %v1116 = vtanh.pop %v1052
        %v1117 = vtanh.pop %v1053
        %v1118 = vtanh.pop %v1054
        %v1119 = vtanh.pop %v1055
        %v1120 = vtanh.pop %v1056
        %v1121 = vtanh.pop %v1057
        %v1122 = vtanh.pop %v1058
        %v1123 = vtanh.pop %v1059
        %v1124 = vtanh.pop %v1060
        %v1125 = vtanh.pop %v1061
        %v1126 = vtanh.pop %v1062
        %v1127 = vtanh.pop %v1063
        %v1128 = vtanh.pop %v1064
        %v1129 = vmul.f32 %v1065, 0.5
        %v1130 = vmul.f32 %v1066, 0.5
        %v1131 = vmul.f32 %v1067, 0.5
        %v1132 = vmul.f32 %v1068, 0.5
        %v1133 = vmul.f32 %v1069, 0.5
        %v1134 = vmul.f32 %v1070, 0.5
        %v1135 = vmul.f32 %v1071, 0.5
        %v1136 = vmul.f32 %v1072, 0.5
        %v1137 = vmul.f32 %v1073, 0.5
        %v1138 = vmul.f32 %v1074, 0.5
        %v1139 = vmul.f32 %v1075, 0.5
        %v1140 = vmul.f32 %v1076, 0.5
        %v1141 = vmul.f32 %v1077, 0.5
        %v1142 = vmul.f32 %v1078, 0.5
        %v1143 = vmul.f32 %v1079, 0.5
        %v1144 = vmul.f32 %v1080, 0.5
        %v1145 = vmul.f32 %v1081, 0.5
        %v1146 = vmul.f32 %v1082, 0.5
        %v1147 = vmul.f32 %v1083, 0.5
        %v1148 = vmul.f32 %v1084, 0.5
        %v1149 = vmul.f32 %v1085, 0.5
        %v1150 = vmul.f32 %v1086, 0.5
        %v1151 = vmul.f32 %v1087, 0.5
        %v1152 = vmul.f32 %v1088, 0.5
        %v1153 = vmul.f32 %v1089, 0.5
        %v1154 = vmul.f32 %v1090, 0.5
        %v1155 = vmul.f32 %v1091, 0.5
        %v1156 = vmul.f32 %v1092, 0.5
        %v1157 = vmul.f32 %v1093, 0.5
        %v1158 = vmul.f32 %v1094, 0.5
        %v1159 = vmul.f32 %v1095, 0.5
        %v1160 = vmul.f32 %v1096, 0.5
        %v1161 = vmul.f32 %v1097, 0.5
        %v1162 = vmul.f32 %v1098, 0.5
        %v1163 = vmul.f32 %v1099, 0.5
        %v1164 = vmul.f32 %v1100, 0.5
        %v1165 = vmul.f32 %v1101, 0.5
        %v1166 = vmul.f32 %v1102, 0.5
        %v1167 = vmul.f32 %v1103, 0.5
        %v1168 = vmul.f32 %v1104, 0.5
        %v1169 = vmul.f32 %v1105, 0.5
        %v1170 = vmul.f32 %v1106, 0.5
        %v1171 = vmul.f32 %v1107, 0.5
        %v1172 = vmul.f32 %v1108, 0.5
        %v1173 = vmul.f32 %v1109, 0.5
        %v1174 = vmul.f32 %v1110, 0.5
        %v1175 = vmul.f32 %v1111, 0.5
        %v1176 = vmul.f32 %v1112, 0.5
        %v1177 = vmul.f32 %v1113, 0.5
        %v1178 = vmul.f32 %v1114, 0.5
        %v1179 = vmul.f32 %v1115, 0.5
        %v1180 = vmul.f32 %v1116, 0.5
        %v1181 = vmul.f32 %v1117, 0.5
        %v1182 = vmul.f32 %v1118, 0.5
        %v1183 = vmul.f32 %v1119, 0.5
        %v1184 = vmul.f32 %v1120, 0.5
        %v1185 = vmul.f32 %v1121, 0.5
        %v1186 = vmul.f32 %v1122, 0.5
        %v1187 = vmul.f32 %v1123, 0.5
        %v1188 = vmul.f32 %v1124, 0.5
        %v1189 = vmul.f32 %v1125, 0.5
        %v1190 = vmul.f32 %v1126, 0.5
        %v1191 = vmul.f32 %v1127, 0.5
        %v1192 = vmul.f32 %v1128, 0.5
        %v1193 = vadd.f32 %v1129, 0.5
        %v1194 = vadd.f32 %v1130, 0.5
        %v1195 = vadd.f32 %v1131, 0.5
        %v1196 = vadd.f32 %v1132, 0.5
        %v1197 = vadd.f32 %v1133, 0.5
        %v1198 = vadd.f32 %v1134, 0.5
        %v1199 = vadd.f32 %v1135, 0.5
        %v1200 = vadd.f32 %v1136, 0.5
        %v1201 = vadd.f32 %v1137, 0.5
        %v1202 = vadd.f32 %v1138, 0.5
        %v1203 = vadd.f32 %v1139, 0.5
        %v1204 = vadd.f32 %v1140, 0.5
        %v1205 = vadd.f32 %v1141, 0.5
        %v1206 = vadd.f32 %v1142, 0.5
        %v1207 = vadd.f32 %v1143, 0.5
        %v1208 = vadd.f32 %v1144, 0.5
        %v1209 = vadd.f32 %v1145, 0.5
        %v1210 = vadd.f32 %v1146, 0.5
        %v1211 = vadd.f32 %v1147, 0.5
        %v1212 = vadd.f32 %v1148, 0.5
        %v1213 = vadd.f32 %v1149, 0.5
        %v1214 = vadd.f32 %v1150, 0.5
        %v1215 = vadd.f32 %v1151, 0.5
        %v1216 = vadd.f32 %v1152, 0.5
        %v1217 = vadd.f32 %v1153, 0.5
        %v1218 = vadd.f32 %v1154, 0.5
        %v1219 = vadd.f32 %v1155, 0.5
        %v1220 = vadd.f32 %v1156, 0.5
        %v1221 = vadd.f32 %v1157, 0.5
        %v1222 = vadd.f32 %v1158, 0.5
        %v1223 = vadd.f32 %v1159, 0.5
        %v1224 = vadd.f32 %v1160, 0.5
        %v1225 = vadd.f32 %v1161, 0.5
        %v1226 = vadd.f32 %v1162, 0.5
        %v1227 = vadd.f32 %v1163, 0.5
        %v1228 = vadd.f32 %v1164, 0.5
        %v1229 = vadd.f32 %v1165, 0.5
        %v1230 = vadd.f32 %v1166, 0.5
        %v1231 = vadd.f32 %v1167, 0.5
        %v1232 = vadd.f32 %v1168, 0.5
        %v1233 = vadd.f32 %v1169, 0.5
        %v1234 = vadd.f32 %v1170, 0.5
        %v1235 = vadd.f32 %v1171, 0.5
        %v1236 = vadd.f32 %v1172, 0.5
        %v1237 = vadd.f32 %v1173, 0.5
        %v1238 = vadd.f32 %v1174, 0.5
        %v1239 = vadd.f32 %v1175, 0.5
        %v1240 = vadd.f32 %v1176, 0.5
        %v1241 = vadd.f32 %v1177, 0.5
        %v1242 = vadd.f32 %v1178, 0.5
        %v1243 = vadd.f32 %v1179, 0.5
        %v1244 = vadd.f32 %v1180, 0.5
        %v1245 = vadd.f32 %v1181, 0.5
        %v1246 = vadd.f32 %v1182, 0.5
        %v1247 = vadd.f32 %v1183, 0.5
        %v1248 = vadd.f32 %v1184, 0.5
        %v1249 = vadd.f32 %v1185, 0.5
        %v1250 = vadd.f32 %v1186, 0.5
        %v1251 = vadd.f32 %v1187, 0.5
        %v1252 = vadd.f32 %v1188, 0.5
        %v1253 = vadd.f32 %v1189, 0.5
        %v1254 = vadd.f32 %v1190, 0.5
        %v1255 = vadd.f32 %v1191, 0.5
        %v1256 = vadd.f32 %v1192, 0.5
        %v1257 = vtanh.pop %v711
        %v1258 = vtanh.pop %v800
        %v1259 = vtanh.pop %v889
        %v1260 = vtanh.pop %v978
        %v1261 = vtanh.pop %v714
        %v1262 = vtanh.pop %v803
        %v1263 = vtanh.pop %v892
        %v1264 = vtanh.pop %v981
        %v1265 = vtanh.pop %v717
        %v1266 = vtanh.pop %v806
        %v1267 = vtanh.pop %v895
        %v1268 = vtanh.pop %v984
        %v1269 = vtanh.pop %v720
        %v1270 = vtanh.pop %v809
        %v1271 = vtanh.pop %v898
        %v1272 = vtanh.pop %v987
        %v1273 = vtanh.pop %v723
        %v1274 = vtanh.pop %v812
        %v1275 = vtanh.pop %v901
        %v1276 = vtanh.pop %v990
        %v1277 = vtanh.pop %v726
        %v1278 = vtanh.pop %v815
        %v1279 = vtanh.pop %v904
        %v1280 = vtanh.pop %v993
        %v1281 = vtanh.pop %v729
        %v1282 = vtanh.pop %v818
        %v1283 = vtanh.pop %v907
        %v1284 = vtanh.pop %v996
        %v1285 = vtanh.pop %v732
        %v1286 = vtanh.pop %v821
        %v1287 = vtanh.pop %v910
        %v1288 = vtanh.pop %v999
        %v1289 = vmul.f32 %v1193, %v1257
        %v1290 = vmul.f32 %v1194, %v1258
        %v1291 = vmul.f32 %v1195, %v1259
        %v1292 = vmul.f32 %v1196, %v1260
        %v1293 = vmul.f32 %v1197, %v1261
        %v1294 = vmul.f32 %v1198, %v1262
        %v1295 = vmul.f32 %v1199, %v1263
        %v1296 = vmul.f32 %v1200, %v1264
        %v1297 = vmul.f32 %v1201, %v1265
        %v1298 = vmul.f32 %v1202, %v1266
        %v1299 = vmul.f32 %v1203, %v1267
        %v1300 = vmul.f32 %v1204, %v1268
        %v1301 = vmul.f32 %v1205, %v1269
        %v1302 = vmul.f32 %v1206, %v1270
        %v1303 = vmul.f32 %v1207, %v1271
        %v1304 = vmul.f32 %v1208, %v1272
        %v1305 = vmul.f32 %v1209, %v1273
        %v1306 = vmul.f32 %v1210, %v1274
        %v1307 = vmul.f32 %v1211, %v1275
        %v1308 = vmul.f32 %v1212, %v1276
        %v1309 = vmul.f32 %v1213, %v1277
        %v1310 = vmul.f32 %v1214, %v1278
        %v1311 = vmul.f32 %v1215, %v1279
        %v1312 = vmul.f32 %v1216, %v1280
        %v1313 = vmul.f32 %v1217, %v1281
        %v1314 = vmul.f32 %v1218, %v1282
        %v1315 = vmul.f32 %v1219, %v1283
        %v1316 = vmul.f32 %v1220, %v1284
        %v1317 = vmul.f32 %v1221, %v1285
        %v1318 = vmul.f32 %v1222, %v1286
        %v1319 = vmul.f32 %v1223, %v1287
        %v1320 = vmul.f32 %v1224, %v1288
        %v1321 = vtanh.pop %v1289
        %v1322 = vtanh.pop %v1290
        %v1323 = vtanh.pop %v1291
        %v1324 = vtanh.pop %v1292
        %v1325 = vtanh.pop %v1293
        %v1326 = vtanh.pop %v1294
        %v1327 = vtanh.pop %v1295
        %v1328 = vtanh.pop %v1296
        %v1329 = vtanh.pop %v1297
        %v1330 = vtanh.pop %v1298
        %v1331 = vtanh.pop %v1299
        %v1332 = vtanh.pop %v1300
        %v1333 = vtanh.pop %v1301
        %v1334 = vtanh.pop %v1302
        %v1335 = vtanh.pop %v1303
        %v1336 = vtanh.pop %v1304
        %v1337 = vtanh.pop %v1305
        %v1338 = vtanh.pop %v1306
        %v1339 = vtanh.pop %v1307
        %v1340 = vtanh.pop %v1308
        %v1341 = vtanh.pop %v1309
        %v1342 = vtanh.pop %v1310
        %v1343 = vtanh.pop %v1311
        %v1344 = vtanh.pop %v1312
        %v1345 = vtanh.pop %v1313
        %v1346 = vtanh.pop %v1314
        %v1347 = vtanh.pop %v1315
        %v1348 = vtanh.pop %v1316
        %v1349 = vtanh.pop %v1317
        %v1350 = vtanh.pop %v1318
        %v1351 = vtanh.pop %v1319
        %v1352 = vtanh.pop %v1320
        %v1353 = vmul.f32 %v1225, %v1321
        %v1354 = vmul.f32 %v1226, %v1322
        %v1355 = vmul.f32 %v1227, %v1323
        %v1356 = vmul.f32 %v1228, %v1324
        %v1357 = vmul.f32 %v1229, %v1325
        %v1358 = vmul.f32 %v1230, %v1326
        %v1359 = vmul.f32 %v1231, %v1327
        %v1360 = vmul.f32 %v1232, %v1328
        %v1361 = vmul.f32 %v1233, %v1329
        %v1362 = vmul.f32 %v1234, %v1330
        %v1363 = vmul.f32 %v1235, %v1331
        %v1364 = vmul.f32 %v1236, %v1332
        %v1365 = vmul.f32 %v1237, %v1333
        %v1366 = vmul.f32 %v1238, %v1334
        %v1367 = vmul.f32 %v1239, %v1335
        %v1368 = vmul.f32 %v1240, %v1336
        %v1369 = vmul.f32 %v1241, %v1337
        %v1370 = vmul.f32 %v1242, %v1338
        %v1371 = vmul.f32 %v1243, %v1339
        %v1372 = vmul.f32 %v1244, %v1340
        %v1373 = vmul.f32 %v1245, %v1341
        %v1374 = vmul.f32 %v1246, %v1342
        %v1375 = vmul.f32 %v1247, %v1343
        %v1376 = vmul.f32 %v1248, %v1344
        %v1377 = vmul.f32 %v1249, %v1345
        %v1378 = vmul.f32 %v1250, %v1346
        %v1379 = vmul.f32 %v1251, %v1347
        %v1380 = vmul.f32 %v1252, %v1348
        %v1381 = vmul.f32 %v1253, %v1349
        %v1382 = vmul.f32 %v1254, %v1350
        %v1383 = vmul.f32 %v1255, %v1351
        %v1384 = vmul.f32 %v1256, %v1352
        %s1385 = scalar_lea.vmem %s2, 192
        %v1386 = vld [vmem:[%s1385] sm:$0xff]
        %v1387 = vld [vmem:[%s1385 + $0x8] sm:$0xff]
        %v1388 = vld [vmem:[%s1385 + $0x10] sm:$0xff]
        %v1389 = vld [vmem:[%s1385 + $0x18] sm:$0xff]
        %v1390 = vld [vmem:[%s1385 + $0x20] sm:$0xff]
        %v1391 = vld [vmem:[%s1385 + $0x28] sm:$0xff]
        %v1392 = vld [vmem:[%s1385 + $0x30] sm:$0xff]
        %v1393 = vld [vmem:[%s1385 + $0x38] sm:$0xff]
        %v1394 = vld [vmem:[%s1385 + $0x40] sm:$0xff]
        %v1395 = vld [vmem:[%s1385 + $0x48] sm:$0xff]
        %v1396 = vld [vmem:[%s1385 + $0x50] sm:$0xff]
        %v1397 = vld [vmem:[%s1385 + $0x58] sm:$0xff]
        %v1398 = vld [vmem:[%s1385 + $0x60] sm:$0xff]
        %v1399 = vld [vmem:[%s1385 + $0x68] sm:$0xff]
        %v1400 = vld [vmem:[%s1385 + $0x70] sm:$0xff]
        %v1401 = vld [vmem:[%s1385 + $0x78] sm:$0xff]
        %v1402 = vld [vmem:[%s1385 + $0x80] sm:$0xff]
        %v1403 = vld [vmem:[%s1385 + $0x88] sm:$0xff]
        %v1404 = vld [vmem:[%s1385 + $0x90] sm:$0xff]
        %v1405 = vld [vmem:[%s1385 + $0x98] sm:$0xff]
        %v1406 = vld [vmem:[%s1385 + $0xa0] sm:$0xff]
        %v1407 = vld [vmem:[%s1385 + $0xa8] sm:$0xff]
        %v1408 = vld [vmem:[%s1385 + $0xb0] sm:$0xff]
        %v1409 = vld [vmem:[%s1385 + $0xb8] sm:$0xff]
        %s1410 = scalar_lea.vmem %s3, 192
        %v1411 = vld [vmem:[%s1410] sm:$0xff]
        %v1412 = vld [vmem:[%s1410 + $0x8] sm:$0xff]
        %v1413 = vld [vmem:[%s1410 + $0x10] sm:$0xff]
        %v1414 = vld [vmem:[%s1410 + $0x18] sm:$0xff]
        %v1415 = vld [vmem:[%s1410 + $0x20] sm:$0xff]
        %v1416 = vld [vmem:[%s1410 + $0x28] sm:$0xff]
        %v1417 = vld [vmem:[%s1410 + $0x30] sm:$0xff]
        %v1418 = vld [vmem:[%s1410 + $0x38] sm:$0xff]
        %v1419 = vld [vmem:[%s1410 + $0x40] sm:$0xff]
        %v1420 = vld [vmem:[%s1410 + $0x48] sm:$0xff]
        %v1421 = vld [vmem:[%s1410 + $0x50] sm:$0xff]
        %v1422 = vld [vmem:[%s1410 + $0x58] sm:$0xff]
        %v1423 = vld [vmem:[%s1410 + $0x60] sm:$0xff]
        %v1424 = vld [vmem:[%s1410 + $0x68] sm:$0xff]
        %v1425 = vld [vmem:[%s1410 + $0x70] sm:$0xff]
        %v1426 = vld [vmem:[%s1410 + $0x78] sm:$0xff]
        %v1427 = vld [vmem:[%s1410 + $0x80] sm:$0xff]
        %v1428 = vld [vmem:[%s1410 + $0x88] sm:$0xff]
        %v1429 = vld [vmem:[%s1410 + $0x90] sm:$0xff]
        %v1430 = vld [vmem:[%s1410 + $0x98] sm:$0xff]
        %v1431 = vld [vmem:[%s1410 + $0xa0] sm:$0xff]
        %v1432 = vld [vmem:[%s1410 + $0xa8] sm:$0xff]
        %v1433 = vld [vmem:[%s1410 + $0xb0] sm:$0xff]
        %v1434 = vld [vmem:[%s1410 + $0xb8] sm:$0xff]
        %1436 = vset.pattern.permute.xlu0 0
        %1437 = vperm.xlu0 %1436, %v1411
        %v1438 = vpop.permute.xlu0 %1437
        %1441 = vset.pattern.permute.xlu0 0
        %1442 = vperm.xlu0 %1441, %v1412
        %v1443 = vpop.permute.xlu0 %1442
        %1446 = vset.pattern.permute.xlu0 0
        %1447 = vperm.xlu0 %1446, %v1413
        %v1448 = vpop.permute.xlu0 %1447
        %1451 = vset.pattern.permute.xlu0 0
        %1452 = vperm.xlu0 %1451, %v1414
        %v1453 = vpop.permute.xlu0 %1452
        %1456 = vset.pattern.permute.xlu0 0
        %1457 = vperm.xlu0 %1456, %v1415
        %v1458 = vpop.permute.xlu0 %1457
        %1461 = vset.pattern.permute.xlu0 0
        %1462 = vperm.xlu0 %1461, %v1416
        %v1463 = vpop.permute.xlu0 %1462
        %1466 = vset.pattern.permute.xlu0 0
        %1467 = vperm.xlu0 %1466, %v1417
        %v1468 = vpop.permute.xlu0 %1467
        %1471 = vset.pattern.permute.xlu0 0
        %1472 = vperm.xlu0 %1471, %v1418
        %v1473 = vpop.permute.xlu0 %1472
        %1476 = vset.pattern.permute.xlu0 0
        %1477 = vperm.xlu0 %1476, %v1419
        %v1478 = vpop.permute.xlu0 %1477
        %1481 = vset.pattern.permute.xlu0 0
        %1482 = vperm.xlu0 %1481, %v1420
        %v1483 = vpop.permute.xlu0 %1482
        %1486 = vset.pattern.permute.xlu0 0
        %1487 = vperm.xlu0 %1486, %v1421
        %v1488 = vpop.permute.xlu0 %1487
        %1491 = vset.pattern.permute.xlu0 0
        %1492 = vperm.xlu0 %1491, %v1422
        %v1493 = vpop.permute.xlu0 %1492
        %1496 = vset.pattern.permute.xlu0 0
        %1497 = vperm.xlu0 %1496, %v1423
        %v1498 = vpop.permute.xlu0 %1497
        %1501 = vset.pattern.permute.xlu0 0
        %1502 = vperm.xlu0 %1501, %v1424
        %v1503 = vpop.permute.xlu0 %1502
        %1506 = vset.pattern.permute.xlu0 0
        %1507 = vperm.xlu0 %1506, %v1425
        %v1508 = vpop.permute.xlu0 %1507
        %1511 = vset.pattern.permute.xlu0 0
        %1512 = vperm.xlu0 %1511, %v1426
        %v1513 = vpop.permute.xlu0 %1512
        %1516 = vset.pattern.permute.xlu0 0
        %1517 = vperm.xlu0 %1516, %v1427
        %v1518 = vpop.permute.xlu0 %1517
        %1521 = vset.pattern.permute.xlu0 0
        %1522 = vperm.xlu0 %1521, %v1428
        %v1523 = vpop.permute.xlu0 %1522
        %1526 = vset.pattern.permute.xlu0 0
        %1527 = vperm.xlu0 %1526, %v1429
        %v1528 = vpop.permute.xlu0 %1527
        %1531 = vset.pattern.permute.xlu0 0
        %1532 = vperm.xlu0 %1531, %v1430
        %v1533 = vpop.permute.xlu0 %1532
        %1536 = vset.pattern.permute.xlu0 0
        %1537 = vperm.xlu0 %1536, %v1431
        %v1538 = vpop.permute.xlu0 %1537
        %1541 = vset.pattern.permute.xlu0 0
        %1542 = vperm.xlu0 %1541, %v1432
        %v1543 = vpop.permute.xlu0 %1542
        %1546 = vset.pattern.permute.xlu0 0
        %1547 = vperm.xlu0 %1546, %v1433
        %v1548 = vpop.permute.xlu0 %1547
        %1551 = vset.pattern.permute.xlu0 0
        %1552 = vperm.xlu0 %1551, %v1434
        %v1553 = vpop.permute.xlu0 %1552
        %v1556 = vsel %vm572, %v1386, 0
        %v1559 = vsel %vm572, %v1387, 0
        %v1562 = vsel %vm572, %v1388, 0
        %v1565 = vsel %vm572, %v1389, 0
        %v1568 = vsel %vm572, %v1390, 0
        %v1571 = vsel %vm572, %v1391, 0
        %v1574 = vsel %vm572, %v1392, 0
        %v1577 = vsel %vm572, %v1393, 0
        %v1580 = vsel %vm572, %v1394, 0
        %v1583 = vsel %vm572, %v1395, 0
        %v1586 = vsel %vm572, %v1396, 0
        %v1589 = vsel %vm572, %v1397, 0
        %v1592 = vsel %vm572, %v1398, 0
        %v1595 = vsel %vm572, %v1399, 0
        %v1598 = vsel %vm572, %v1400, 0
        %v1601 = vsel %vm572, %v1401, 0
        %v1604 = vsel %vm572, %v1402, 0
        %v1607 = vsel %vm572, %v1403, 0
        %v1610 = vsel %vm572, %v1404, 0
        %v1613 = vsel %vm572, %v1405, 0
        %v1616 = vsel %vm572, %v1406, 0
        %v1619 = vsel %vm572, %v1407, 0
        %v1622 = vsel %vm572, %v1408, 0
        %v1625 = vsel %vm572, %v1409, 0
        %1627 = vmatpush.msra.mxu0 0.0
        %1628 = vmatpush.msra.mxu0 0.0
        %1629 = vmatpush.msra.mxu0 0.0
        %1630 = vmatpush.msra.mxu0 0.0
        %1631 = vmatpush.msra.mxu0 0.0
        %1632 = vmatpush.msra.mxu0 0.0
        %1633 = vmatpush.msra.mxu0 0.0
        %1634 = vmatpush.msra.mxu0 0.0
        %1635 = vmatpush.msra.mxu0 %v1381
        %1636 = vmatpush.msra.mxu0 %v1377
        %1637 = vmatpush.msra.mxu0 %v1373
        %1638 = vmatpush.msra.mxu0 %v1369
        %1639 = vmatpush.msra.mxu0 %v1365
        %1640 = vmatpush.msra.mxu0 %v1361
        %1641 = vmatpush.msra.mxu0 %v1357
        %1642 = vmatpush.msra.mxu0 %v1353
        %1643 = vmatmul.f32.gmra.mxu0 %v1556
        %v1644 = vpop.f32.mrf.mxu0
        %v1645 = vadd.f32 %v1438, %v1644
        %1646 = vmatmul.f32.gmra.mxu0 %v1559
        %v1647 = vpop.f32.mrf.mxu0
        %v1648 = vadd.f32 %v1443, %v1647
        %1649 = vmatmul.f32.gmra.mxu0 %v1562
        %v1650 = vpop.f32.mrf.mxu0
        %v1651 = vadd.f32 %v1448, %v1650
        %1652 = vmatmul.f32.gmra.mxu0 %v1565
        %v1653 = vpop.f32.mrf.mxu0
        %v1654 = vadd.f32 %v1453, %v1653
        %1655 = vmatmul.f32.gmra.mxu0 %v1568
        %v1656 = vpop.f32.mrf.mxu0
        %v1657 = vadd.f32 %v1458, %v1656
        %1658 = vmatmul.f32.gmra.mxu0 %v1571
        %v1659 = vpop.f32.mrf.mxu0
        %v1660 = vadd.f32 %v1463, %v1659
        %1661 = vmatmul.f32.gmra.mxu0 %v1574
        %v1662 = vpop.f32.mrf.mxu0
        %v1663 = vadd.f32 %v1468, %v1662
        %1664 = vmatmul.f32.gmra.mxu0 %v1577
        %v1665 = vpop.f32.mrf.mxu0
        %v1666 = vadd.f32 %v1473, %v1665
        %1667 = vmatmul.f32.gmra.mxu0 %v1580
        %v1668 = vpop.f32.mrf.mxu0
        %v1669 = vadd.f32 %v1478, %v1668
        %1670 = vmatmul.f32.gmra.mxu0 %v1583
        %v1671 = vpop.f32.mrf.mxu0
        %v1672 = vadd.f32 %v1483, %v1671
        %1673 = vmatmul.f32.gmra.mxu0 %v1586
        %v1674 = vpop.f32.mrf.mxu0
        %v1675 = vadd.f32 %v1488, %v1674
        %1676 = vmatmul.f32.gmra.mxu0 %v1589
        %v1677 = vpop.f32.mrf.mxu0
        %v1678 = vadd.f32 %v1493, %v1677
        %1679 = vmatmul.f32.gmra.mxu0 %v1592
        %v1680 = vpop.f32.mrf.mxu0
        %v1681 = vadd.f32 %v1498, %v1680
        %1682 = vmatmul.f32.gmra.mxu0 %v1595
        %v1683 = vpop.f32.mrf.mxu0
        %v1684 = vadd.f32 %v1503, %v1683
        %1685 = vmatmul.f32.gmra.mxu0 %v1598
        %v1686 = vpop.f32.mrf.mxu0
        %v1687 = vadd.f32 %v1508, %v1686
        %1688 = vmatmul.f32.gmra.mxu0 %v1601
        %v1689 = vpop.f32.mrf.mxu0
        %v1690 = vadd.f32 %v1513, %v1689
        %1691 = vmatmul.f32.gmra.mxu0 %v1604
        %v1692 = vpop.f32.mrf.mxu0
        %v1693 = vadd.f32 %v1518, %v1692
        %1694 = vmatmul.f32.gmra.mxu0 %v1607
        %v1695 = vpop.f32.mrf.mxu0
        %v1696 = vadd.f32 %v1523, %v1695
        %1697 = vmatmul.f32.gmra.mxu0 %v1610
        %v1698 = vpop.f32.mrf.mxu0
        %v1699 = vadd.f32 %v1528, %v1698
        %1700 = vmatmul.f32.gmra.mxu0 %v1613
        %v1701 = vpop.f32.mrf.mxu0
        %v1702 = vadd.f32 %v1533, %v1701
        %1703 = vmatmul.f32.gmra.mxu0 %v1616
        %v1704 = vpop.f32.mrf.mxu0
        %v1705 = vadd.f32 %v1538, %v1704
        %1706 = vmatmul.f32.gmra.mxu0 %v1619
        %v1707 = vpop.f32.mrf.mxu0
        %v1708 = vadd.f32 %v1543, %v1707
        %1709 = vmatmul.f32.gmra.mxu0 %v1622
        %v1710 = vpop.f32.mrf.mxu0
        %v1711 = vadd.f32 %v1548, %v1710
        %1712 = vmatmul.f32.gmra.mxu0 %v1625
        %v1713 = vpop.f32.mrf.mxu0
        %v1714 = vadd.f32 %v1553, %v1713
        %1715 = vdwg.mxu0
        %1716 = vmatpush.msra.mxu0 0.0
        %1717 = vmatpush.msra.mxu0 0.0
        %1718 = vmatpush.msra.mxu0 0.0
        %1719 = vmatpush.msra.mxu0 0.0
        %1720 = vmatpush.msra.mxu0 0.0
        %1721 = vmatpush.msra.mxu0 0.0
        %1722 = vmatpush.msra.mxu0 0.0
        %1723 = vmatpush.msra.mxu0 0.0
        %1724 = vmatpush.msra.mxu0 %v1382
        %1725 = vmatpush.msra.mxu0 %v1378
        %1726 = vmatpush.msra.mxu0 %v1374
        %1727 = vmatpush.msra.mxu0 %v1370
        %1728 = vmatpush.msra.mxu0 %v1366
        %1729 = vmatpush.msra.mxu0 %v1362
        %1730 = vmatpush.msra.mxu0 %v1358
        %1731 = vmatpush.msra.mxu0 %v1354
        %1732 = vmatmul.f32.gmra.mxu0 %v1556
        %v1733 = vpop.f32.mrf.mxu0
        %v1734 = vadd.f32 %v1438, %v1733
        %1735 = vmatmul.f32.gmra.mxu0 %v1559
        %v1736 = vpop.f32.mrf.mxu0
        %v1737 = vadd.f32 %v1443, %v1736
        %1738 = vmatmul.f32.gmra.mxu0 %v1562
        %v1739 = vpop.f32.mrf.mxu0
        %v1740 = vadd.f32 %v1448, %v1739
        %1741 = vmatmul.f32.gmra.mxu0 %v1565
        %v1742 = vpop.f32.mrf.mxu0
        %v1743 = vadd.f32 %v1453, %v1742
        %1744 = vmatmul.f32.gmra.mxu0 %v1568
        %v1745 = vpop.f32.mrf.mxu0
        %v1746 = vadd.f32 %v1458, %v1745
        %1747 = vmatmul.f32.gmra.mxu0 %v1571
        %v1748 = vpop.f32.mrf.mxu0
        %v1749 = vadd.f32 %v1463, %v1748
        %1750 = vmatmul.f32.gmra.mxu0 %v1574
        %v1751 = vpop.f32.mrf.mxu0
        %v1752 = vadd.f32 %v1468, %v1751
        %1753 = vmatmul.f32.gmra.mxu0 %v1577
        %v1754 = vpop.f32.mrf.mxu0
        %v1755 = vadd.f32 %v1473, %v1754
        %1756 = vmatmul.f32.gmra.mxu0 %v1580
        %v1757 = vpop.f32.mrf.mxu0
        %v1758 = vadd.f32 %v1478, %v1757
        %1759 = vmatmul.f32.gmra.mxu0 %v1583
        %v1760 = vpop.f32.mrf.mxu0
        %v1761 = vadd.f32 %v1483, %v1760
        %1762 = vmatmul.f32.gmra.mxu0 %v1586
        %v1763 = vpop.f32.mrf.mxu0
        %v1764 = vadd.f32 %v1488, %v1763
        %1765 = vmatmul.f32.gmra.mxu0 %v1589
        %v1766 = vpop.f32.mrf.mxu0
        %v1767 = vadd.f32 %v1493, %v1766
        %1768 = vmatmul.f32.gmra.mxu0 %v1592
        %v1769 = vpop.f32.mrf.mxu0
        %v1770 = vadd.f32 %v1498, %v1769
        %1771 = vmatmul.f32.gmra.mxu0 %v1595
        %v1772 = vpop.f32.mrf.mxu0
        %v1773 = vadd.f32 %v1503, %v1772
        %1774 = vmatmul.f32.gmra.mxu0 %v1598
        %v1775 = vpop.f32.mrf.mxu0
        %v1776 = vadd.f32 %v1508, %v1775
        %1777 = vmatmul.f32.gmra.mxu0 %v1601
        %v1778 = vpop.f32.mrf.mxu0
        %v1779 = vadd.f32 %v1513, %v1778
        %1780 = vmatmul.f32.gmra.mxu0 %v1604
        %v1781 = vpop.f32.mrf.mxu0
        %v1782 = vadd.f32 %v1518, %v1781
        %1783 = vmatmul.f32.gmra.mxu0 %v1607
        %v1784 = vpop.f32.mrf.mxu0
        %v1785 = vadd.f32 %v1523, %v1784
        %1786 = vmatmul.f32.gmra.mxu0 %v1610
        %v1787 = vpop.f32.mrf.mxu0
        %v1788 = vadd.f32 %v1528, %v1787
        %1789 = vmatmul.f32.gmra.mxu0 %v1613
        %v1790 = vpop.f32.mrf.mxu0
        %v1791 = vadd.f32 %v1533, %v1790
        %1792 = vmatmul.f32.gmra.mxu0 %v1616
        %v1793 = vpop.f32.mrf.mxu0
        %v1794 = vadd.f32 %v1538, %v1793
        %1795 = vmatmul.f32.gmra.mxu0 %v1619
        %v1796 = vpop.f32.mrf.mxu0
        %v1797 = vadd.f32 %v1543, %v1796
        %1798 = vmatmul.f32.gmra.mxu0 %v1622
        %v1799 = vpop.f32.mrf.mxu0
        %v1800 = vadd.f32 %v1548, %v1799
        %1801 = vmatmul.f32.gmra.mxu0 %v1625
        %v1802 = vpop.f32.mrf.mxu0
        %v1803 = vadd.f32 %v1553, %v1802
        %1804 = vdwg.mxu0
        %1805 = vmatpush.msra.mxu0 0.0
        %1806 = vmatpush.msra.mxu0 0.0
        %1807 = vmatpush.msra.mxu0 0.0
        %1808 = vmatpush.msra.mxu0 0.0
        %1809 = vmatpush.msra.mxu0 0.0
        %1810 = vmatpush.msra.mxu0 0.0
        %1811 = vmatpush.msra.mxu0 0.0
        %1812 = vmatpush.msra.mxu0 0.0
        %1813 = vmatpush.msra.mxu0 %v1383
        %1814 = vmatpush.msra.mxu0 %v1379
        %1815 = vmatpush.msra.mxu0 %v1375
        %1816 = vmatpush.msra.mxu0 %v1371
        %1817 = vmatpush.msra.mxu0 %v1367
        %1818 = vmatpush.msra.mxu0 %v1363
        %1819 = vmatpush.msra.mxu0 %v1359
        %1820 = vmatpush.msra.mxu0 %v1355
        %1821 = vmatmul.f32.gmra.mxu0 %v1556
        %v1822 = vpop.f32.mrf.mxu0
        %v1823 = vadd.f32 %v1438, %v1822
        %1824 = vmatmul.f32.gmra.mxu0 %v1559
        %v1825 = vpop.f32.mrf.mxu0
        %v1826 = vadd.f32 %v1443, %v1825
        %1827 = vmatmul.f32.gmra.mxu0 %v1562
        %v1828 = vpop.f32.mrf.mxu0
        %v1829 = vadd.f32 %v1448, %v1828
        %1830 = vmatmul.f32.gmra.mxu0 %v1565
        %v1831 = vpop.f32.mrf.mxu0
        %v1832 = vadd.f32 %v1453, %v1831
        %1833 = vmatmul.f32.gmra.mxu0 %v1568
        %v1834 = vpop.f32.mrf.mxu0
        %v1835 = vadd.f32 %v1458, %v1834
        %1836 = vmatmul.f32.gmra.mxu0 %v1571
        %v1837 = vpop.f32.mrf.mxu0
        %v1838 = vadd.f32 %v1463, %v1837
        %1839 = vmatmul.f32.gmra.mxu0 %v1574
        %v1840 = vpop.f32.mrf.mxu0
        %v1841 = vadd.f32 %v1468, %v1840
        %1842 = vmatmul.f32.gmra.mxu0 %v1577
        %v1843 = vpop.f32.mrf.mxu0
        %v1844 = vadd.f32 %v1473, %v1843
        %1845 = vmatmul.f32.gmra.mxu0 %v1580
        %v1846 = vpop.f32.mrf.mxu0
        %v1847 = vadd.f32 %v1478, %v1846
        %1848 = vmatmul.f32.gmra.mxu0 %v1583
        %v1849 = vpop.f32.mrf.mxu0
        %v1850 = vadd.f32 %v1483, %v1849
        %1851 = vmatmul.f32.gmra.mxu0 %v1586
        %v1852 = vpop.f32.mrf.mxu0
        %v1853 = vadd.f32 %v1488, %v1852
        %1854 = vmatmul.f32.gmra.mxu0 %v1589
        %v1855 = vpop.f32.mrf.mxu0
        %v1856 = vadd.f32 %v1493, %v1855
        %1857 = vmatmul.f32.gmra.mxu0 %v1592
        %v1858 = vpop.f32.mrf.mxu0
        %v1859 = vadd.f32 %v1498, %v1858
        %1860 = vmatmul.f32.gmra.mxu0 %v1595
        %v1861 = vpop.f32.mrf.mxu0
        %v1862 = vadd.f32 %v1503, %v1861
        %1863 = vmatmul.f32.gmra.mxu0 %v1598
        %v1864 = vpop.f32.mrf.mxu0
        %v1865 = vadd.f32 %v1508, %v1864
        %1866 = vmatmul.f32.gmra.mxu0 %v1601
        %v1867 = vpop.f32.mrf.mxu0
        %v1868 = vadd.f32 %v1513, %v1867
        %1869 = vmatmul.f32.gmra.mxu0 %v1604
        %v1870 = vpop.f32.mrf.mxu0
        %v1871 = vadd.f32 %v1518, %v1870
        %1872 = vmatmul.f32.gmra.mxu0 %v1607
        %v1873 = vpop.f32.mrf.mxu0
        %v1874 = vadd.f32 %v1523, %v1873
        %1875 = vmatmul.f32.gmra.mxu0 %v1610
        %v1876 = vpop.f32.mrf.mxu0
        %v1877 = vadd.f32 %v1528, %v1876
        %1878 = vmatmul.f32.gmra.mxu0 %v1613
        %v1879 = vpop.f32.mrf.mxu0
        %v1880 = vadd.f32 %v1533, %v1879
        %1881 = vmatmul.f32.gmra.mxu0 %v1616
        %v1882 = vpop.f32.mrf.mxu0
        %v1883 = vadd.f32 %v1538, %v1882
        %1884 = vmatmul.f32.gmra.mxu0 %v1619
        %v1885 = vpop.f32.mrf.mxu0
        %v1886 = vadd.f32 %v1543, %v1885
        %1887 = vmatmul.f32.gmra.mxu0 %v1622
        %v1888 = vpop.f32.mrf.mxu0
        %v1889 = vadd.f32 %v1548, %v1888
        %1890 = vmatmul.f32.gmra.mxu0 %v1625
        %v1891 = vpop.f32.mrf.mxu0
        %v1892 = vadd.f32 %v1553, %v1891
        %1893 = vdwg.mxu0
        %1894 = vmatpush.msra.mxu0 0.0
        %1895 = vmatpush.msra.mxu0 0.0
        %1896 = vmatpush.msra.mxu0 0.0
        %1897 = vmatpush.msra.mxu0 0.0
        %1898 = vmatpush.msra.mxu0 0.0
        %1899 = vmatpush.msra.mxu0 0.0
        %1900 = vmatpush.msra.mxu0 0.0
        %1901 = vmatpush.msra.mxu0 0.0
        %1902 = vmatpush.msra.mxu0 %v1384
        %1903 = vmatpush.msra.mxu0 %v1380
        %1904 = vmatpush.msra.mxu0 %v1376
        %1905 = vmatpush.msra.mxu0 %v1372
        %1906 = vmatpush.msra.mxu0 %v1368
        %1907 = vmatpush.msra.mxu0 %v1364
        %1908 = vmatpush.msra.mxu0 %v1360
        %1909 = vmatpush.msra.mxu0 %v1356
        %1910 = vmatmul.f32.gmra.mxu0 %v1556
        %v1911 = vpop.f32.mrf.mxu0
        %v1912 = vadd.f32 %v1438, %v1911
        %1913 = vmatmul.f32.gmra.mxu0 %v1559
        %v1914 = vpop.f32.mrf.mxu0
        %v1915 = vadd.f32 %v1443, %v1914
        %1916 = vmatmul.f32.gmra.mxu0 %v1562
        %v1917 = vpop.f32.mrf.mxu0
        %v1918 = vadd.f32 %v1448, %v1917
        %1919 = vmatmul.f32.gmra.mxu0 %v1565
        %v1920 = vpop.f32.mrf.mxu0
        %v1921 = vadd.f32 %v1453, %v1920
        %1922 = vmatmul.f32.gmra.mxu0 %v1568
        %v1923 = vpop.f32.mrf.mxu0
        %v1924 = vadd.f32 %v1458, %v1923
        %1925 = vmatmul.f32.gmra.mxu0 %v1571
        %v1926 = vpop.f32.mrf.mxu0
        %v1927 = vadd.f32 %v1463, %v1926
        %1928 = vmatmul.f32.gmra.mxu0 %v1574
        %v1929 = vpop.f32.mrf.mxu0
        %v1930 = vadd.f32 %v1468, %v1929
        %1931 = vmatmul.f32.gmra.mxu0 %v1577
        %v1932 = vpop.f32.mrf.mxu0
        %v1933 = vadd.f32 %v1473, %v1932
        %1934 = vmatmul.f32.gmra.mxu0 %v1580
        %v1935 = vpop.f32.mrf.mxu0
        %v1936 = vadd.f32 %v1478, %v1935
        %1937 = vmatmul.f32.gmra.mxu0 %v1583
        %v1938 = vpop.f32.mrf.mxu0
        %v1939 = vadd.f32 %v1483, %v1938
        %1940 = vmatmul.f32.gmra.mxu0 %v1586
        %v1941 = vpop.f32.mrf.mxu0
        %v1942 = vadd.f32 %v1488, %v1941
        %1943 = vmatmul.f32.gmra.mxu0 %v1589
        %v1944 = vpop.f32.mrf.mxu0
        %v1945 = vadd.f32 %v1493, %v1944
        %1946 = vmatmul.f32.gmra.mxu0 %v1592
        %v1947 = vpop.f32.mrf.mxu0
        %v1948 = vadd.f32 %v1498, %v1947
        %1949 = vmatmul.f32.gmra.mxu0 %v1595
        %v1950 = vpop.f32.mrf.mxu0
        %v1951 = vadd.f32 %v1503, %v1950
        %1952 = vmatmul.f32.gmra.mxu0 %v1598
        %v1953 = vpop.f32.mrf.mxu0
        %v1954 = vadd.f32 %v1508, %v1953
        %1955 = vmatmul.f32.gmra.mxu0 %v1601
        %v1956 = vpop.f32.mrf.mxu0
        %v1957 = vadd.f32 %v1513, %v1956
        %1958 = vmatmul.f32.gmra.mxu0 %v1604
        %v1959 = vpop.f32.mrf.mxu0
        %v1960 = vadd.f32 %v1518, %v1959
        %1961 = vmatmul.f32.gmra.mxu0 %v1607
        %v1962 = vpop.f32.mrf.mxu0
        %v1963 = vadd.f32 %v1523, %v1962
        %1964 = vmatmul.f32.gmra.mxu0 %v1610
        %v1965 = vpop.f32.mrf.mxu0
        %v1966 = vadd.f32 %v1528, %v1965
        %1967 = vmatmul.f32.gmra.mxu0 %v1613
        %v1968 = vpop.f32.mrf.mxu0
        %v1969 = vadd.f32 %v1533, %v1968
        %1970 = vmatmul.f32.gmra.mxu0 %v1616
        %v1971 = vpop.f32.mrf.mxu0
        %v1972 = vadd.f32 %v1538, %v1971
        %1973 = vmatmul.f32.gmra.mxu0 %v1619
        %v1974 = vpop.f32.mrf.mxu0
        %v1975 = vadd.f32 %v1543, %v1974
        %1976 = vmatmul.f32.gmra.mxu0 %v1622
        %v1977 = vpop.f32.mrf.mxu0
        %v1978 = vadd.f32 %v1548, %v1977
        %1979 = vmatmul.f32.gmra.mxu0 %v1625
        %v1980 = vpop.f32.mrf.mxu0
        %v1981 = vadd.f32 %v1553, %v1980
        %1982 = vdwg.mxu0
        %v1983 = vmul.f32 %v1645, 0.5
        %v1984 = vmul.f32 %v1734, 0.5
        %v1985 = vmul.f32 %v1823, 0.5
        %v1986 = vmul.f32 %v1912, 0.5
        %v1987 = vmul.f32 %v1648, 0.5
        %v1988 = vmul.f32 %v1737, 0.5
        %v1989 = vmul.f32 %v1826, 0.5
        %v1990 = vmul.f32 %v1915, 0.5
        %v1991 = vmul.f32 %v1651, 0.5
        %v1992 = vmul.f32 %v1740, 0.5
        %v1993 = vmul.f32 %v1829, 0.5
        %v1994 = vmul.f32 %v1918, 0.5
        %v1995 = vmul.f32 %v1654, 0.5
        %v1996 = vmul.f32 %v1743, 0.5
        %v1997 = vmul.f32 %v1832, 0.5
        %v1998 = vmul.f32 %v1921, 0.5
        %v1999 = vmul.f32 %v1657, 0.5
        %v2000 = vmul.f32 %v1746, 0.5
        %v2001 = vmul.f32 %v1835, 0.5
        %v2002 = vmul.f32 %v1924, 0.5
        %v2003 = vmul.f32 %v1660, 0.5
        %v2004 = vmul.f32 %v1749, 0.5
        %v2005 = vmul.f32 %v1838, 0.5
        %v2006 = vmul.f32 %v1927, 0.5
        %v2007 = vmul.f32 %v1663, 0.5
        %v2008 = vmul.f32 %v1752, 0.5
        %v2009 = vmul.f32 %v1841, 0.5
        %v2010 = vmul.f32 %v1930, 0.5
        %v2011 = vmul.f32 %v1666, 0.5
        %v2012 = vmul.f32 %v1755, 0.5
        %v2013 = vmul.f32 %v1844, 0.5
        %v2014 = vmul.f32 %v1933, 0.5
        %v2015 = vmul.f32 %v1669, 0.5
        %v2016 = vmul.f32 %v1758, 0.5
        %v2017 = vmul.f32 %v1847, 0.5
        %v2018 = vmul.f32 %v1936, 0.5
        %v2019 = vmul.f32 %v1672, 0.5
        %v2020 = vmul.f32 %v1761, 0.5
        %v2021 = vmul.f32 %v1850, 0.5
        %v2022 = vmul.f32 %v1939, 0.5
        %v2023 = vmul.f32 %v1675, 0.5
        %v2024 = vmul.f32 %v1764, 0.5
        %v2025 = vmul.f32 %v1853, 0.5
        %v2026 = vmul.f32 %v1942, 0.5
        %v2027 = vmul.f32 %v1678, 0.5
        %v2028 = vmul.f32 %v1767, 0.5
        %v2029 = vmul.f32 %v1856, 0.5
        %v2030 = vmul.f32 %v1945, 0.5
        %v2031 = vmul.f32 %v1681, 0.5
        %v2032 = vmul.f32 %v1770, 0.5
        %v2033 = vmul.f32 %v1859, 0.5
        %v2034 = vmul.f32 %v1948, 0.5
        %v2035 = vmul.f32 %v1684, 0.5
        %v2036 = vmul.f32 %v1773, 0.5
        %v2037 = vmul.f32 %v1862, 0.5
        %v2038 = vmul.f32 %v1951, 0.5
        %v2039 = vmul.f32 %v1687, 0.5
        %v2040 = vmul.f32 %v1776, 0.5
        %v2041 = vmul.f32 %v1865, 0.5
        %v2042 = vmul.f32 %v1954, 0.5
        %v2043 = vmul.f32 %v1690, 0.5
        %v2044 = vmul.f32 %v1779, 0.5
        %v2045 = vmul.f32 %v1868, 0.5
        %v2046 = vmul.f32 %v1957, 0.5
        %v2047 = vtanh.pop %v1983
        %v2048 = vtanh.pop %v1984
        %v2049 = vtanh.pop %v1985
        %v2050 = vtanh.pop %v1986
        %v2051 = vtanh.pop %v1987
        %v2052 = vtanh.pop %v1988
        %v2053 = vtanh.pop %v1989
        %v2054 = vtanh.pop %v1990
        %v2055 = vtanh.pop %v1991
        %v2056 = vtanh.pop %v1992
        %v2057 = vtanh.pop %v1993
        %v2058 = vtanh.pop %v1994
        %v2059 = vtanh.pop %v1995
        %v2060 = vtanh.pop %v1996
        %v2061 = vtanh.pop %v1997
        %v2062 = vtanh.pop %v1998
        %v2063 = vtanh.pop %v1999
        %v2064 = vtanh.pop %v2000
        %v2065 = vtanh.pop %v2001
        %v2066 = vtanh.pop %v2002
        %v2067 = vtanh.pop %v2003
        %v2068 = vtanh.pop %v2004
        %v2069 = vtanh.pop %v2005
        %v2070 = vtanh.pop %v2006
        %v2071 = vtanh.pop %v2007
        %v2072 = vtanh.pop %v2008
        %v2073 = vtanh.pop %v2009
        %v2074 = vtanh.pop %v2010
        %v2075 = vtanh.pop %v2011
        %v2076 = vtanh.pop %v2012
        %v2077 = vtanh.pop %v2013
        %v2078 = vtanh.pop %v2014
        %v2079 = vtanh.pop %v2015
        %v2080 = vtanh.pop %v2016
        %v2081 = vtanh.pop %v2017
        %v2082 = vtanh.pop %v2018
        %v2083 = vtanh.pop %v2019
        %v2084 = vtanh.pop %v2020
        %v2085 = vtanh.pop %v2021
        %v2086 = vtanh.pop %v2022
        %v2087 = vtanh.pop %v2023
        %v2088 = vtanh.pop %v2024
        %v2089 = vtanh.pop %v2025
        %v2090 = vtanh.pop %v2026
        %v2091 = vtanh.pop %v2027
        %v2092 = vtanh.pop %v2028
        %v2093 = vtanh.pop %v2029
        %v2094 = vtanh.pop %v2030
        %v2095 = vtanh.pop %v2031
        %v2096 = vtanh.pop %v2032
        %v2097 = vtanh.pop %v2033
        %v2098 = vtanh.pop %v2034
        %v2099 = vtanh.pop %v2035
        %v2100 = vtanh.pop %v2036
        %v2101 = vtanh.pop %v2037
        %v2102 = vtanh.pop %v2038
        %v2103 = vtanh.pop %v2039
        %v2104 = vtanh.pop %v2040
        %v2105 = vtanh.pop %v2041
        %v2106 = vtanh.pop %v2042
        %v2107 = vtanh.pop %v2043
        %v2108 = vtanh.pop %v2044
        %v2109 = vtanh.pop %v2045
        %v2110 = vtanh.pop %v2046
        %v2111 = vmul.f32 %v2047, 0.5
        %v2112 = vmul.f32 %v2048, 0.5
        %v2113 = vmul.f32 %v2049, 0.5
        %v2114 = vmul.f32 %v2050, 0.5
        %v2115 = vmul.f32 %v2051, 0.5
        %v2116 = vmul.f32 %v2052, 0.5
        %v2117 = vmul.f32 %v2053, 0.5
        %v2118 = vmul.f32 %v2054, 0.5
        %v2119 = vmul.f32 %v2055, 0.5
        %v2120 = vmul.f32 %v2056, 0.5
        %v2121 = vmul.f32 %v2057, 0.5
        %v2122 = vmul.f32 %v2058, 0.5
        %v2123 = vmul.f32 %v2059, 0.5
        %v2124 = vmul.f32 %v2060, 0.5
        %v2125 = vmul.f32 %v2061, 0.5
        %v2126 = vmul.f32 %v2062, 0.5
        %v2127 = vmul.f32 %v2063, 0.5
        %v2128 = vmul.f32 %v2064, 0.5
        %v2129 = vmul.f32 %v2065, 0.5
        %v2130 = vmul.f32 %v2066, 0.5
        %v2131 = vmul.f32 %v2067, 0.5
        %v2132 = vmul.f32 %v2068, 0.5
        %v2133 = vmul.f32 %v2069, 0.5
        %v2134 = vmul.f32 %v2070, 0.5
        %v2135 = vmul.f32 %v2071, 0.5
        %v2136 = vmul.f32 %v2072, 0.5
        %v2137 = vmul.f32 %v2073, 0.5
        %v2138 = vmul.f32 %v2074, 0.5
        %v2139 = vmul.f32 %v2075, 0.5
        %v2140 = vmul.f32 %v2076, 0.5
        %v2141 = vmul.f32 %v2077, 0.5
        %v2142 = vmul.f32 %v2078, 0.5
        %v2143 = vmul.f32 %v2079, 0.5
        %v2144 = vmul.f32 %v2080, 0.5
        %v2145 = vmul.f32 %v2081, 0.5
        %v2146 = vmul.f32 %v2082, 0.5
        %v2147 = vmul.f32 %v2083, 0.5
        %v2148 = vmul.f32 %v2084, 0.5
        %v2149 = vmul.f32 %v2085, 0.5
        %v2150 = vmul.f32 %v2086, 0.5
        %v2151 = vmul.f32 %v2087, 0.5
        %v2152 = vmul.f32 %v2088, 0.5
        %v2153 = vmul.f32 %v2089, 0.5
        %v2154 = vmul.f32 %v2090, 0.5
        %v2155 = vmul.f32 %v2091, 0.5
        %v2156 = vmul.f32 %v2092, 0.5
        %v2157 = vmul.f32 %v2093, 0.5
        %v2158 = vmul.f32 %v2094, 0.5
        %v2159 = vmul.f32 %v2095, 0.5
        %v2160 = vmul.f32 %v2096, 0.5
        %v2161 = vmul.f32 %v2097, 0.5
        %v2162 = vmul.f32 %v2098, 0.5
        %v2163 = vmul.f32 %v2099, 0.5
        %v2164 = vmul.f32 %v2100, 0.5
        %v2165 = vmul.f32 %v2101, 0.5
        %v2166 = vmul.f32 %v2102, 0.5
        %v2167 = vmul.f32 %v2103, 0.5
        %v2168 = vmul.f32 %v2104, 0.5
        %v2169 = vmul.f32 %v2105, 0.5
        %v2170 = vmul.f32 %v2106, 0.5
        %v2171 = vmul.f32 %v2107, 0.5
        %v2172 = vmul.f32 %v2108, 0.5
        %v2173 = vmul.f32 %v2109, 0.5
        %v2174 = vmul.f32 %v2110, 0.5
        %v2175 = vadd.f32 %v2111, 0.5
        %v2176 = vadd.f32 %v2112, 0.5
        %v2177 = vadd.f32 %v2113, 0.5
        %v2178 = vadd.f32 %v2114, 0.5
        %v2179 = vadd.f32 %v2115, 0.5
        %v2180 = vadd.f32 %v2116, 0.5
        %v2181 = vadd.f32 %v2117, 0.5
        %v2182 = vadd.f32 %v2118, 0.5
        %v2183 = vadd.f32 %v2119, 0.5
        %v2184 = vadd.f32 %v2120, 0.5
        %v2185 = vadd.f32 %v2121, 0.5
        %v2186 = vadd.f32 %v2122, 0.5
        %v2187 = vadd.f32 %v2123, 0.5
        %v2188 = vadd.f32 %v2124, 0.5
        %v2189 = vadd.f32 %v2125, 0.5
        %v2190 = vadd.f32 %v2126, 0.5
        %v2191 = vadd.f32 %v2127, 0.5
        %v2192 = vadd.f32 %v2128, 0.5
        %v2193 = vadd.f32 %v2129, 0.5
        %v2194 = vadd.f32 %v2130, 0.5
        %v2195 = vadd.f32 %v2131, 0.5
        %v2196 = vadd.f32 %v2132, 0.5
        %v2197 = vadd.f32 %v2133, 0.5
        %v2198 = vadd.f32 %v2134, 0.5
        %v2199 = vadd.f32 %v2135, 0.5
        %v2200 = vadd.f32 %v2136, 0.5
        %v2201 = vadd.f32 %v2137, 0.5
        %v2202 = vadd.f32 %v2138, 0.5
        %v2203 = vadd.f32 %v2139, 0.5
        %v2204 = vadd.f32 %v2140, 0.5
        %v2205 = vadd.f32 %v2141, 0.5
        %v2206 = vadd.f32 %v2142, 0.5
        %v2207 = vadd.f32 %v2143, 0.5
        %v2208 = vadd.f32 %v2144, 0.5
        %v2209 = vadd.f32 %v2145, 0.5
        %v2210 = vadd.f32 %v2146, 0.5
        %v2211 = vadd.f32 %v2147, 0.5
        %v2212 = vadd.f32 %v2148, 0.5
        %v2213 = vadd.f32 %v2149, 0.5
        %v2214 = vadd.f32 %v2150, 0.5
        %v2215 = vadd.f32 %v2151, 0.5
        %v2216 = vadd.f32 %v2152, 0.5
        %v2217 = vadd.f32 %v2153, 0.5
        %v2218 = vadd.f32 %v2154, 0.5
        %v2219 = vadd.f32 %v2155, 0.5
        %v2220 = vadd.f32 %v2156, 0.5
        %v2221 = vadd.f32 %v2157, 0.5
        %v2222 = vadd.f32 %v2158, 0.5
        %v2223 = vadd.f32 %v2159, 0.5
        %v2224 = vadd.f32 %v2160, 0.5
        %v2225 = vadd.f32 %v2161, 0.5
        %v2226 = vadd.f32 %v2162, 0.5
        %v2227 = vadd.f32 %v2163, 0.5
        %v2228 = vadd.f32 %v2164, 0.5
        %v2229 = vadd.f32 %v2165, 0.5
        %v2230 = vadd.f32 %v2166, 0.5
        %v2231 = vadd.f32 %v2167, 0.5
        %v2232 = vadd.f32 %v2168, 0.5
        %v2233 = vadd.f32 %v2169, 0.5
        %v2234 = vadd.f32 %v2170, 0.5
        %v2235 = vadd.f32 %v2171, 0.5
        %v2236 = vadd.f32 %v2172, 0.5
        %v2237 = vadd.f32 %v2173, 0.5
        %v2238 = vadd.f32 %v2174, 0.5
        %v2239 = vtanh.pop %v1693
        %v2240 = vtanh.pop %v1782
        %v2241 = vtanh.pop %v1871
        %v2242 = vtanh.pop %v1960
        %v2243 = vtanh.pop %v1696
        %v2244 = vtanh.pop %v1785
        %v2245 = vtanh.pop %v1874
        %v2246 = vtanh.pop %v1963
        %v2247 = vtanh.pop %v1699
        %v2248 = vtanh.pop %v1788
        %v2249 = vtanh.pop %v1877
        %v2250 = vtanh.pop %v1966
        %v2251 = vtanh.pop %v1702
        %v2252 = vtanh.pop %v1791
        %v2253 = vtanh.pop %v1880
        %v2254 = vtanh.pop %v1969
        %v2255 = vtanh.pop %v1705
        %v2256 = vtanh.pop %v1794
        %v2257 = vtanh.pop %v1883
        %v2258 = vtanh.pop %v1972
        %v2259 = vtanh.pop %v1708
        %v2260 = vtanh.pop %v1797
        %v2261 = vtanh.pop %v1886
        %v2262 = vtanh.pop %v1975
        %v2263 = vtanh.pop %v1711
        %v2264 = vtanh.pop %v1800
        %v2265 = vtanh.pop %v1889
        %v2266 = vtanh.pop %v1978
        %v2267 = vtanh.pop %v1714
        %v2268 = vtanh.pop %v1803
        %v2269 = vtanh.pop %v1892
        %v2270 = vtanh.pop %v1981
        %v2271 = vmul.f32 %v2175, %v2239
        %v2272 = vmul.f32 %v2176, %v2240
        %v2273 = vmul.f32 %v2177, %v2241
        %v2274 = vmul.f32 %v2178, %v2242
        %v2275 = vmul.f32 %v2179, %v2243
        %v2276 = vmul.f32 %v2180, %v2244
        %v2277 = vmul.f32 %v2181, %v2245
        %v2278 = vmul.f32 %v2182, %v2246
        %v2279 = vmul.f32 %v2183, %v2247
        %v2280 = vmul.f32 %v2184, %v2248
        %v2281 = vmul.f32 %v2185, %v2249
        %v2282 = vmul.f32 %v2186, %v2250
        %v2283 = vmul.f32 %v2187, %v2251
        %v2284 = vmul.f32 %v2188, %v2252
        %v2285 = vmul.f32 %v2189, %v2253
        %v2286 = vmul.f32 %v2190, %v2254
        %v2287 = vmul.f32 %v2191, %v2255
        %v2288 = vmul.f32 %v2192, %v2256
        %v2289 = vmul.f32 %v2193, %v2257
        %v2290 = vmul.f32 %v2194, %v2258
        %v2291 = vmul.f32 %v2195, %v2259
        %v2292 = vmul.f32 %v2196, %v2260
        %v2293 = vmul.f32 %v2197, %v2261
        %v2294 = vmul.f32 %v2198, %v2262
        %v2295 = vmul.f32 %v2199, %v2263
        %v2296 = vmul.f32 %v2200, %v2264
        %v2297 = vmul.f32 %v2201, %v2265
        %v2298 = vmul.f32 %v2202, %v2266
        %v2299 = vmul.f32 %v2203, %v2267
        %v2300 = vmul.f32 %v2204, %v2268
        %v2301 = vmul.f32 %v2205, %v2269
        %v2302 = vmul.f32 %v2206, %v2270
        %v2303 = vtanh.pop %v2271
        %v2304 = vtanh.pop %v2272
        %v2305 = vtanh.pop %v2273
        %v2306 = vtanh.pop %v2274
        %v2307 = vtanh.pop %v2275
        %v2308 = vtanh.pop %v2276
        %v2309 = vtanh.pop %v2277
        %v2310 = vtanh.pop %v2278
        %v2311 = vtanh.pop %v2279
        %v2312 = vtanh.pop %v2280
        %v2313 = vtanh.pop %v2281
        %v2314 = vtanh.pop %v2282
        %v2315 = vtanh.pop %v2283
        %v2316 = vtanh.pop %v2284
        %v2317 = vtanh.pop %v2285
        %v2318 = vtanh.pop %v2286
        %v2319 = vtanh.pop %v2287
        %v2320 = vtanh.pop %v2288
        %v2321 = vtanh.pop %v2289
        %v2322 = vtanh.pop %v2290
        %v2323 = vtanh.pop %v2291
        %v2324 = vtanh.pop %v2292
        %v2325 = vtanh.pop %v2293
        %v2326 = vtanh.pop %v2294
        %v2327 = vtanh.pop %v2295
        %v2328 = vtanh.pop %v2296
        %v2329 = vtanh.pop %v2297
        %v2330 = vtanh.pop %v2298
        %v2331 = vtanh.pop %v2299
        %v2332 = vtanh.pop %v2300
        %v2333 = vtanh.pop %v2301
        %v2334 = vtanh.pop %v2302
        %v2335 = vmul.f32 %v2207, %v2303
        %v2336 = vmul.f32 %v2208, %v2304
        %v2337 = vmul.f32 %v2209, %v2305
        %v2338 = vmul.f32 %v2210, %v2306
        %v2339 = vmul.f32 %v2211, %v2307
        %v2340 = vmul.f32 %v2212, %v2308
        %v2341 = vmul.f32 %v2213, %v2309
        %v2342 = vmul.f32 %v2214, %v2310
        %v2343 = vmul.f32 %v2215, %v2311
        %v2344 = vmul.f32 %v2216, %v2312
        %v2345 = vmul.f32 %v2217, %v2313
        %v2346 = vmul.f32 %v2218, %v2314
        %v2347 = vmul.f32 %v2219, %v2315
        %v2348 = vmul.f32 %v2220, %v2316
        %v2349 = vmul.f32 %v2221, %v2317
        %v2350 = vmul.f32 %v2222, %v2318
        %v2351 = vmul.f32 %v2223, %v2319
        %v2352 = vmul.f32 %v2224, %v2320
        %v2353 = vmul.f32 %v2225, %v2321
        %v2354 = vmul.f32 %v2226, %v2322
        %v2355 = vmul.f32 %v2227, %v2323
        %v2356 = vmul.f32 %v2228, %v2324
        %v2357 = vmul.f32 %v2229, %v2325
        %v2358 = vmul.f32 %v2230, %v2326
        %v2359 = vmul.f32 %v2231, %v2327
        %v2360 = vmul.f32 %v2232, %v2328
        %v2361 = vmul.f32 %v2233, %v2329
        %v2362 = vmul.f32 %v2234, %v2330
        %v2363 = vmul.f32 %v2235, %v2331
        %v2364 = vmul.f32 %v2236, %v2332
        %v2365 = vmul.f32 %v2237, %v2333
        %v2366 = vmul.f32 %v2238, %v2334
        %v2367 = vld [vmem:[%s4] sm:$0x3]
        %v2368 = vld [vmem:[%s5] sm:$0x3]
        %2370 = vset.pattern.permute.xlu0 0
        %2371 = vperm.xlu0 %2370, %v2368
        %v2372 = vpop.permute.xlu0 %2371
        %v2375 = vsel %vm572, %v2367, 0
        %2377 = vmatpush.msra.mxu0 0.0
        %2378 = vmatpush.msra.mxu0 0.0
        %2379 = vmatpush.msra.mxu0 0.0
        %2380 = vmatpush.msra.mxu0 0.0
        %2381 = vmatpush.msra.mxu0 0.0
        %2382 = vmatpush.msra.mxu0 0.0
        %2383 = vmatpush.msra.mxu0 0.0
        %2384 = vmatpush.msra.mxu0 0.0
        %2385 = vmatpush.msra.mxu0 %v2363
        %2386 = vmatpush.msra.mxu0 %v2359
        %2387 = vmatpush.msra.mxu0 %v2355
        %2388 = vmatpush.msra.mxu0 %v2351
        %2389 = vmatpush.msra.mxu0 %v2347
        %2390 = vmatpush.msra.mxu0 %v2343
        %2391 = vmatpush.msra.mxu0 %v2339
        %2392 = vmatpush.msra.mxu0 %v2335
        %2393 = vmatmul.f32.gmra.mxu0 %v2375
        %v2394 = vpop.f32.mrf.mxu0
        %v2395 = vadd.f32 %v2372, %v2394
        %2396 = vdwg.mxu0
        %2397 = vmatpush.msra.mxu0 0.0
        %2398 = vmatpush.msra.mxu0 0.0
        %2399 = vmatpush.msra.mxu0 0.0
        %2400 = vmatpush.msra.mxu0 0.0
        %2401 = vmatpush.msra.mxu0 0.0
        %2402 = vmatpush.msra.mxu0 0.0
        %2403 = vmatpush.msra.mxu0 0.0
        %2404 = vmatpush.msra.mxu0 0.0
        %2405 = vmatpush.msra.mxu0 %v2364
        %2406 = vmatpush.msra.mxu0 %v2360
        %2407 = vmatpush.msra.mxu0 %v2356
        %2408 = vmatpush.msra.mxu0 %v2352
        %2409 = vmatpush.msra.mxu0 %v2348
        %2410 = vmatpush.msra.mxu0 %v2344
        %2411 = vmatpush.msra.mxu0 %v2340
        %2412 = vmatpush.msra.mxu0 %v2336
        %2413 = vmatmul.f32.gmra.mxu0 %v2375
        %v2414 = vpop.f32.mrf.mxu0
        %v2415 = vadd.f32 %v2372, %v2414
        %2416 = vdwg.mxu0
        %2417 = vmatpush.msra.mxu0 0.0
        %2418 = vmatpush.msra.mxu0 0.0
        %2419 = vmatpush.msra.mxu0 0.0
        %2420 = vmatpush.msra.mxu0 0.0
        %2421 = vmatpush.msra.mxu0 0.0
        %2422 = vmatpush.msra.mxu0 0.0
        %2423 = vmatpush.msra.mxu0 0.0
        %2424 = vmatpush.msra.mxu0 0.0
        %2425 = vmatpush.msra.mxu0 %v2365
        %2426 = vmatpush.msra.mxu0 %v2361
        %2427 = vmatpush.msra.mxu0 %v2357
        %2428 = vmatpush.msra.mxu0 %v2353
        %2429 = vmatpush.msra.mxu0 %v2349
        %2430 = vmatpush.msra.mxu0 %v2345
        %2431 = vmatpush.msra.mxu0 %v2341
        %2432 = vmatpush.msra.mxu0 %v2337
        %2433 = vmatmul.f32.gmra.mxu0 %v2375
        %v2434 = vpop.f32.mrf.mxu0
        %v2435 = vadd.f32 %v2372, %v2434
        %2436 = vdwg.mxu0
        %2437 = vmatpush.msra.mxu0 0.0
        %2438 = vmatpush.msra.mxu0 0.0
        %2439 = vmatpush.msra.mxu0 0.0
        %2440 = vmatpush.msra.mxu0 0.0
        %2441 = vmatpush.msra.mxu0 0.0
        %2442 = vmatpush.msra.mxu0 0.0
        %2443 = vmatpush.msra.mxu0 0.0
        %2444 = vmatpush.msra.mxu0 0.0
        %2445 = vmatpush.msra.mxu0 %v2366
        %2446 = vmatpush.msra.mxu0 %v2362
        %2447 = vmatpush.msra.mxu0 %v2358
        %2448 = vmatpush.msra.mxu0 %v2354
        %2449 = vmatpush.msra.mxu0 %v2350
        %2450 = vmatpush.msra.mxu0 %v2346
        %2451 = vmatpush.msra.mxu0 %v2342
        %2452 = vmatpush.msra.mxu0 %v2338
        %2453 = vmatmul.f32.gmra.mxu0 %v2375
        %v2454 = vpop.f32.mrf.mxu0
        %v2455 = vadd.f32 %v2372, %v2454
        %2456 = vdwg.mxu0
        %v2461 = vrot.slane %v2415, 6
        %v2462 = vrot.slane %v2435, 4
        %v2463 = vrot.slane %v2455, 2
        %vm2464 = vcmask 1041408
        %v2465 = vsel %vm2464, %v2395, %v2461
        %vm2466 = vcmask 1045508
        %v2467 = vsel %vm2466, %v2462, %v2463
        %vm2468 = vcmask 1043456
        %v2469 = vsel %vm2468, %v2465, %v2467
        %2471 = vst [vmem:[%s243] sm:$0xff] %v2469
        %s2472 = sand.u32 %s159, 1
        %s2473 = scalar_lea.sflag [#allocation3], %s2472
        %s2474 = sand.u32 %s159, 1
        %s2475 = smul.addr %s2474, 8
        %s2476 = scalar_lea.vmem [#allocation2], %s2475
        // Predicated region
        $region45: #{tpu_custom_call.1} parent=43 // pred_check
          %p2477 = pneg %p169
        $region46: #{tpu_custom_call.1} parent=43 // pred_check_branch
          %2479 = sbr.rel (%p2477) target = $region48
        $region47: #{tpu_custom_call.1} parent=43 // pred_region
          %s2480 = smul.u32 4, %s20
          %2482 = vsyncadd %s2473, 0
          %s2483 = smul.addr %s2480, 2
          %s2484 = scalar_lea.hbm %s6, %s2483
          %s2486 = sshll.u32 %s2476, 4
          %s2487 = int_to_ptr.vmem [resolvable:$true] %s2486
          %s2488 = sshll.u32 %s2484, 4
          %s2489 = int_to_ptr.hbm [resolvable:$true] %s2488
          %2491 = dma.vmem_to_hbm [thread:$0]  %s2487, 128, %s2489, %s2473
        $region48: #{tpu_custom_call.1} parent=43 // pred_fallthru
          _
      $region44: #{tpu_custom_call.1} parent=5 // pred_fallthru
        _
      %p2492 = scmp.le.s32.totalorder 2, %s15
      // Predicated region
      $region49: #{tpu_custom_call.1} parent=5 // pred_check
        %p2493 = pneg %p2492
      $region50: #{tpu_custom_call.1} parent=5 // pred_check_branch
        %2495 = sbr.rel (%p2493) target = $region52
      $region51: #{tpu_custom_call.1} parent=5 // pred_region
        %s2496 = ssub.s32 %s15, 2
        // Predicated region
        $region53: #{tpu_custom_call.1} parent=51 // pred_check
          %p2497 = pneg %p175
        $region54: #{tpu_custom_call.1} parent=51 // pred_check_branch
          %2499 = sbr.rel (%p2497) target = $region56
        $region55: #{tpu_custom_call.1} parent=51 // pred_region
          %s2500 = sand.u32 %s160, 1
          %s2501 = scalar_lea.sflag [#allocation3], %s2500
          %s2502 = sand.u32 %s160, 1
          %s2503 = smul.addr %s2502, 8
          %s2504 = scalar_lea.vmem [#allocation2], %s2503
          %2506 = dma.done %s2501, 128
        $region56: #{tpu_custom_call.1} parent=51 // pred_fallthru
          _
      $region52: #{tpu_custom_call.1} parent=5 // pred_fallthru
        _
    $region6: #{tpu_custom_call.1} parent=1 // loop_footer
      %s19 = sadd.s32 1, %s15
    $region7: #{tpu_custom_call.1} parent=1 // loop_footer_branch
      %14 = sbr.rel target = $region3
    $region8: #{tpu_custom_call.1} parent=1 // loop_exit
      _
    %2507 = vsyncpa [#allocation3], 1
    %s2508 = scalar_lea.sflag [#allocation3], 1
    %2509 = vsyncpa %s2508, 1

</llo_original>
